<compile_context>
chip_gen: v5e
topology: v5e:2x2
jax: 0.10.0
libtpu: 0.0.40
codegen_flags: <defaults>
</compile_context>

<pallas_src>
import functools

import jax
import jax.numpy as jnp
from jax.experimental import pallas as pl
from jax.experimental.pallas import tpu as pltpu


LANES = 128
MXU_DTYPE = jnp.bfloat16


def _round_up(x, m):
    return (x + m - 1) // m * m


def _images_per_block(n):
    """Largest divisor of n that is <= min(8, n//2): keeps per-step DMA sane and
    gives the parallel grid >=2 steps whenever n >= 2 (v7x has 2 TensorCores)."""
    cap = min(8, max(1, n // 2))
    for g in range(cap, 0, -1):
        if n % g == 0:
            return g
    return 1


def _pick_tile_m(m, tm_max=1024, align=16):
    """Row tile for the fc head: 16-sublane aligned (bf16 packing), large (up to
    1024 rows), but capped so the grid has >=2 steps when the batch allows."""
    mp = _round_up(m, align)
    if mp <= align:
        return mp                      # tiny batch: single (unavoidable) step
    tm = min(tm_max, mp)
    if mp // tm < 2:
        tm = _round_up((mp + 1) // 2, align)
    return tm


# ----------------------------- Pallas kernels ------------------------------ #

def _conv_rows_kernel(x_ref, w_ref, b_ref, o_ref, *, kh, oh):
    """Fused im2col conv + bias + ReLU for a block of images.

    x_ref: (g, H, W*C)       packed input rows (lane dim = W*C), read once
    w_ref: (kh, W*C, OW*OC)  banded weight slabs, VMEM-resident
    b_ref: (1, OW*OC)        bias row (col = ow*OC + oc)
    o_ref: (g, OH, OW*OC)    ReLU'd conv output, compact (no channel padding)
    """
    g = x_ref.shape[0]
    nout = o_ref.shape[-1]
    for gi in range(g):                                  # g <= 8, unrolled
        acc = jnp.zeros((oh, nout), jnp.float32)
        for ki in range(kh):                             # KH row-shifted matmuls
            xs = x_ref[gi, ki:ki + oh, :]                # (OH, W*C) VMEM window
            acc += jnp.dot(xs, w_ref[ki], preferred_element_type=jnp.float32)
        y = jnp.maximum(acc + b_ref[...], 0.0)
        o_ref[gi, :, :] = y.astype(o_ref.dtype)


def conv_stage(x, w_banded, bias_row, *, oh):
    """x: (N, H, W*C) bf16 -> (N, OH, OW*OC) bf16 (valid conv, stride 1, ReLU)."""
    n, h, wc = x.shape
    kh, wc2, nout = w_banded.shape
    assert wc == wc2
    g = _images_per_block(n)
    kernel = functools.partial(_conv_rows_kernel, kh=kh, oh=oh)
    return pl.pallas_call(
        kernel,
        out_shape=jax.ShapeDtypeStruct((n, oh, nout), MXU_DTYPE),
        grid=(n // g,),
        in_specs=[
            pl.BlockSpec((g, h, wc), lambda i: (i, 0, 0)),       # image block
            pl.BlockSpec((kh, wc, nout), lambda i: (0, 0, 0)),   # weights resident
            pl.BlockSpec((1, nout), lambda i: (0, 0)),           # bias resident
        ],
        out_specs=pl.BlockSpec((g, oh, nout), lambda i: (i, 0, 0)),
        compiler_params=pltpu.CompilerParams(dimension_semantics=("parallel",)),
    )(x, w_banded, bias_row)


def _fc_fused_kernel(x_ref, w1_ref, b1_ref, w2_ref, b2_ref, w3_ref, b3_ref, o_ref):
    h = jnp.dot(x_ref[...], w1_ref[...], preferred_element_type=jnp.float32)
    h = jnp.maximum(h + b1_ref[...], 0.0)
    h = jnp.dot(h.astype(w2_ref.dtype), w2_ref[...], preferred_element_type=jnp.float32)
    h = jnp.maximum(h + b2_ref[...], 0.0)
    h = jnp.dot(h.astype(w3_ref.dtype), w3_ref[...], preferred_element_type=jnp.float32)
    o_ref[...] = (h + b3_ref[...]).astype(o_ref.dtype)


def fc_head(x, w1, b1, w2, b2, w3, b3):
    """Fused fc1+fc2+fc3 (intermediates stay in vregs/VMEM). x:(M,400) -> (M,128)."""
    m, k = x.shape
    assert w1.shape[0] == k
    tm = _pick_tile_m(m)
    mp = _round_up(m, tm)
    xp = x.astype(MXU_DTYPE)
    if mp != m:
        xp = jnp.pad(xp, ((0, mp - m), (0, 0)))

    const2 = lambda i: (0, 0)
    out = pl.pallas_call(
        _fc_fused_kernel,
        out_shape=jax.ShapeDtypeStruct((mp, w3.shape[1]), jnp.float32),
        grid=(mp // tm,),
        in_specs=[
            pl.BlockSpec((tm, k), lambda i: (i, 0)),              # row tile
            pl.BlockSpec(w1.shape, const2), pl.BlockSpec((1, w1.shape[1]), const2),
            pl.BlockSpec(w2.shape, const2), pl.BlockSpec((1, w2.shape[1]), const2),
            pl.BlockSpec(w3.shape, const2), pl.BlockSpec((1, w3.shape[1]), const2),
        ],
        out_specs=pl.BlockSpec((tm, w3.shape[1]), lambda i: (i, 0)),
        compiler_params=pltpu.CompilerParams(dimension_semantics=("parallel",)),
    )(xp, w1, b1, w2, b2, w3, b3)
    return out[:m]


# --------------------------- parameter handling ----------------------------- #

def init_params(key):
    """Deterministic PyTorch-style uniform(-1/sqrt(fan_in), 1/sqrt(fan_in)) init."""
    def uinit(k, shape, fan_in):
        bound = 1.0 / jnp.sqrt(jnp.float32(fan_in))
        return jax.random.uniform(k, shape, jnp.float32, -bound, bound)

    ks = jax.random.split(key, 10)
    return {
        "conv1_w": uinit(ks[0], (6, 3, 5, 5), 3 * 5 * 5),
        "conv1_b": uinit(ks[1], (6,), 3 * 5 * 5),
        "conv2_w": uinit(ks[2], (16, 6, 5, 5), 6 * 5 * 5),
        "conv2_b": uinit(ks[3], (16,), 6 * 5 * 5),
        "fc1_w":   uinit(ks[4], (120, 400), 400),
        "fc1_b":   uinit(ks[5], (120,), 400),
        "fc2_w":   uinit(ks[6], (84, 120), 120),
        "fc2_b":   uinit(ks[7], (84,), 120),
        "fc3_w":   uinit(ks[8], (10, 84), 84),
        "fc3_b":   uinit(ks[9], (10,), 84),
    }


def _banded_conv_weight(w_oihw, w_in):
    """torch (OC, C, KH, KW) conv weight -> (KH, W*C, OW*OC) banded slabs (bf16).

    Slab ki satisfies  (x_row[r+ki] @ slab_ki)[ow*OC + oc]
        = sum_{kj,c} x[r+ki, (ow+kj)*C + c] * w[oc, c, ki, kj],
    so summing the KH slab matmuls yields the full valid conv for output row r.
    """
    oc_n, c_n, kh, kw = w_oihw.shape
    ow_n = w_in - kw + 1
    jw = jnp.arange(w_in)[:, None]
    ow = jnp.arange(ow_n)[None, :]
    kj = jw - ow                                            # (W, OW)
    mask = (kj >= 0) & (kj < kw)
    slabs = []
    for ki in range(kh):
        wp = jnp.transpose(w_oihw[:, :, ki, :], (2, 1, 0))  # (KW, C, OC)
        sel = wp[jnp.clip(kj, 0, kw - 1)]                   # (W, OW, C, OC)
        sel = jnp.where(mask[:, :, None, None], sel, 0.0)
        sel = jnp.transpose(sel, (0, 2, 1, 3))              # (W, C, OW, OC)
        slabs.append(sel.reshape(w_in * c_n, ow_n * oc_n))
    return jnp.stack(slabs, axis=0).astype(MXU_DTYPE)


def _conv_bias_row(b, ow_n):
    # output lane col = ow*OC + oc  ->  bias b[oc]
    return jnp.tile(b, ow_n).reshape(1, -1).astype(jnp.float32)


def prepare_params(p):
    """One-time repack: torch layouts -> banded conv slabs + padded FC weights."""
    def pad_to(a, shape):
        return jnp.pad(a, [(0, s - d) for d, s in zip(a.shape, shape)])

    # fc1 absorbs the (c,h,w) -> (h,w,c) flatten-order change of the NHWC pipeline;
    # K stays the real 400 features (review #2: no padded channels reach fc1).
    f1 = p["fc1_w"].reshape(120, 16, 5, 5).transpose(2, 3, 1, 0)   # (h, w, c, out)
    f1 = pad_to(f1.reshape(400, 120), (400, LANES)).astype(MXU_DTYPE)

    def fc_w(w):                       # (out, in) -> (128, 128) bf16, zero padded
        return pad_to(w.T, (LANES, LANES)).astype(MXU_DTYPE)

    def vec(b):                        # (n,) -> (1, 128) f32
        return pad_to(b.reshape(1, -1), (1, LANES)).astype(jnp.float32)

    return {
        "c1w": _banded_conv_weight(p["conv1_w"], w_in=32),   # (5,  96, 168)
        "c1b": _conv_bias_row(p["conv1_b"], ow_n=28),        # (1, 168)
        "c2w": _banded_conv_weight(p["conv2_w"], w_in=14),   # (5,  84, 160)
        "c2b": _conv_bias_row(p["conv2_b"], ow_n=10),        # (1, 160)
        "f1w": f1,                    "f1b": vec(p["fc1_b"]),
        "f2w": fc_w(p["fc2_w"]),      "f2b": vec(p["fc2_b"]),
        "f3w": fc_w(p["fc3_w"]),      "f3b": vec(p["fc3_b"]),
    }


# ------------------------------ Net forward --------------------------------- #

def net_forward(pp, x_nchw):
    n = x_nchw.shape[0]
    # (N,3,32,32) -> packed (N, 32, 32*3) bf16; the only layout transpose in the net.
    x = x_nchw.transpose(0, 2, 3, 1).reshape(n, 32, 96).astype(MXU_DTYPE)

    y = conv_stage(x, pp["c1w"], pp["c1b"], oh=28)                 # (N, 28, 168)
    # 2x2/2 max-pool + repack for conv2: free metadata reshape + tiny (~9 KB/img)
    # reduce, left to XLA glue (see TODO at top of file).
    y = y.reshape(n, 14, 2, 14, 2, 6).max(axis=(2, 4)).reshape(n, 14, 84)

    y = conv_stage(y, pp["c2w"], pp["c2b"], oh=10)                 # (N, 10, 160)
    y = y.reshape(n, 5, 2, 5, 2, 16).max(axis=(2, 4)).reshape(n, 400)

    logits = fc_head(y, pp["f1w"], pp["f1b"], pp["f2w"], pp["f2b"],
                     pp["f3w"], pp["f3b"])                          # (N, 128)
    return logits[:, :10]


def net_reference(params, x):
    """Pure-JAX f32 reference (no Pallas) for a sanity check."""
    dn = ("NCHW", "OIHW", "NCHW")
    hp = jax.lax.Precision.HIGHEST

    def conv(x, w, b):
        y = jax.lax.conv_general_dilated(x, w, (1, 1), "VALID",
                                         dimension_numbers=dn, precision=hp)
        return jnp.maximum(y + b[None, :, None, None], 0.0)

    def pool(x):
        return jax.lax.reduce_window(x, -jnp.inf, jax.lax.max,
                                     (1, 1, 2, 2), (1, 1, 2, 2), "VALID")

    y = pool(conv(x, params["conv1_w"], params["conv1_b"]))
    y = pool(conv(y, params["conv2_w"], params["conv2_b"]))
    y = y.reshape(y.shape[0], 400)
    y = jnp.maximum(y @ params["fc1_w"].T + params["fc1_b"], 0.0)
    y = jnp.maximum(y @ params["fc2_w"].T + params["fc2_b"], 0.0)
    return y @ params["fc3_w"].T + params["fc3_b"]


if __name__ == "__main__":
    key = jax.random.PRNGKey(0)
    pkey, xkey = jax.random.split(key)
    params = init_params(pkey)
    x = jax.random.normal(xkey, (2, 3, 32, 32), jnp.float32)

    prepped = prepare_params(params)
    fwd = jax.jit(net_forward)
    out = jax.block_until_ready(fwd(prepped, x))
    assert out.shape == (2, 10), out.shape

    ref = net_reference(params, x)
    # Tolerance accounts for bf16 MXU operands / bf16 activations (f32 accumulation);
    # any indexing, banded-weight or flatten-order bug would produce O(0.3+) errors.
    max_err = float(jnp.max(jnp.abs(out - ref)))
    assert max_err < 1e-1, f"mismatch vs reference: {max_err}"

    print("KERNEL_OK")
</pallas_src>

<mosaic_0001>
module attributes {stable_mosaic.version = 11 : i64} {
  func.func @_conv_rows_kernel(%arg0: i32, %arg1: memref<1x32x96xbf16, #tpu.memory_space<vmem>>, %arg2: memref<5x96x168xbf16, #tpu.memory_space<vmem>>, %arg3: memref<1x168xf32, #tpu.memory_space<vmem>>, %arg4: memref<1x28x168xbf16, #tpu.memory_space<vmem>>) attributes {dimension_semantics = [#tpu.dimension_semantics<parallel>], iteration_bounds = array<i64: 2>, scalar_prefetch = 0 : i64, scratch_operands = 0 : i64, tpu.core_type = #tpu.core_type<tc>, window_params = [{transform_indices = @transform_0, window_bounds = array<i64: 1, 32, 96>}, {pipeline_mode = #tpu.pipeline_mode<synchronous>, transform_indices = @transform_1, window_bounds = array<i64: 5, 96, 168>}, {pipeline_mode = #tpu.pipeline_mode<synchronous>, transform_indices = @transform_2, window_bounds = array<i64: 1, 168>}, {transform_indices = @transform_3, window_bounds = array<i64: 1, 28, 168>}]} {
    %cst = arith.constant 0.000000e+00 : f32
    %0 = vector.broadcast %cst : f32 to vector<28x168xf32>
    %c0 = arith.constant 0 : index
    %c0_0 = arith.constant 0 : index
    %c0_1 = arith.constant 0 : index
    %1 = vector.load %arg1[%c0, %c0_0, %c0_1] : memref<1x32x96xbf16, #tpu.memory_space<vmem>>, vector<1x28x96xbf16>
    %2 = vector.shape_cast %1 : vector<1x28x96xbf16> to vector<28x96xbf16>
    %c0_2 = arith.constant 0 : index
    %c0_3 = arith.constant 0 : index
    %c0_4 = arith.constant 0 : index
    %3 = vector.load %arg2[%c0_2, %c0_3, %c0_4] : memref<5x96x168xbf16, #tpu.memory_space<vmem>>, vector<1x96x168xbf16>
    %4 = vector.shape_cast %3 : vector<1x96x168xbf16> to vector<96x168xbf16>
    %cst_5 = arith.constant dense<0.000000e+00> : vector<28x168xf32>
    %5 = tpu.matmul %2, %4, %cst_5 {dimension_numbers = #tpu.dot_dimension_numbers<[1], [0], [0], [1], [0, 0, 1, 1], [], []>} : vector<28x96xbf16>, vector<96x168xbf16>, vector<28x168xf32> -> vector<28x168xf32>
    %6 = arith.addf %0, %5 : vector<28x168xf32>
    %c0_6 = arith.constant 0 : index
    %c1 = arith.constant 1 : index
    %c0_7 = arith.constant 0 : index
    %7 = vector.load %arg1[%c0_6, %c1, %c0_7] : memref<1x32x96xbf16, #tpu.memory_space<vmem>>, vector<1x28x96xbf16>
    %8 = vector.shape_cast %7 : vector<1x28x96xbf16> to vector<28x96xbf16>
    %c1_8 = arith.constant 1 : index
    %c0_9 = arith.constant 0 : index
    %c0_10 = arith.constant 0 : index
    %9 = vector.load %arg2[%c1_8, %c0_9, %c0_10] : memref<5x96x168xbf16, #tpu.memory_space<vmem>>, vector<1x96x168xbf16>
    %10 = vector.shape_cast %9 : vector<1x96x168xbf16> to vector<96x168xbf16>
    %cst_11 = arith.constant dense<0.000000e+00> : vector<28x168xf32>
    %11 = tpu.matmul %8, %10, %cst_11 {dimension_numbers = #tpu.dot_dimension_numbers<[1], [0], [0], [1], [0, 0, 1, 1], [], []>} : vector<28x96xbf16>, vector<96x168xbf16>, vector<28x168xf32> -> vector<28x168xf32>
    %12 = arith.addf %6, %11 : vector<28x168xf32>
    %c0_12 = arith.constant 0 : index
    %c2 = arith.constant 2 : index
    %c0_13 = arith.constant 0 : index
    %13 = vector.load %arg1[%c0_12, %c2, %c0_13] : memref<1x32x96xbf16, #tpu.memory_space<vmem>>, vector<1x28x96xbf16>
    %14 = vector.shape_cast %13 : vector<1x28x96xbf16> to vector<28x96xbf16>
    %c2_14 = arith.constant 2 : index
    %c0_15 = arith.constant 0 : index
    %c0_16 = arith.constant 0 : index
    %15 = vector.load %arg2[%c2_14, %c0_15, %c0_16] : memref<5x96x168xbf16, #tpu.memory_space<vmem>>, vector<1x96x168xbf16>
    %16 = vector.shape_cast %15 : vector<1x96x168xbf16> to vector<96x168xbf16>
    %cst_17 = arith.constant dense<0.000000e+00> : vector<28x168xf32>
    %17 = tpu.matmul %14, %16, %cst_17 {dimension_numbers = #tpu.dot_dimension_numbers<[1], [0], [0], [1], [0, 0, 1, 1], [], []>} : vector<28x96xbf16>, vector<96x168xbf16>, vector<28x168xf32> -> vector<28x168xf32>
    %18 = arith.addf %12, %17 : vector<28x168xf32>
    %c0_18 = arith.constant 0 : index
    %c3 = arith.constant 3 : index
    %c0_19 = arith.constant 0 : index
    %19 = vector.load %arg1[%c0_18, %c3, %c0_19] : memref<1x32x96xbf16, #tpu.memory_space<vmem>>, vector<1x28x96xbf16>
    %20 = vector.shape_cast %19 : vector<1x28x96xbf16> to vector<28x96xbf16>
    %c3_20 = arith.constant 3 : index
    %c0_21 = arith.constant 0 : index
    %c0_22 = arith.constant 0 : index
    %21 = vector.load %arg2[%c3_20, %c0_21, %c0_22] : memref<5x96x168xbf16, #tpu.memory_space<vmem>>, vector<1x96x168xbf16>
    %22 = vector.shape_cast %21 : vector<1x96x168xbf16> to vector<96x168xbf16>
    %cst_23 = arith.constant dense<0.000000e+00> : vector<28x168xf32>
    %23 = tpu.matmul %20, %22, %cst_23 {dimension_numbers = #tpu.dot_dimension_numbers<[1], [0], [0], [1], [0, 0, 1, 1], [], []>} : vector<28x96xbf16>, vector<96x168xbf16>, vector<28x168xf32> -> vector<28x168xf32>
    %24 = arith.addf %18, %23 : vector<28x168xf32>
    %c0_24 = arith.constant 0 : index
    %c4 = arith.constant 4 : index
    %c0_25 = arith.constant 0 : index
    %25 = vector.load %arg1[%c0_24, %c4, %c0_25] : memref<1x32x96xbf16, #tpu.memory_space<vmem>>, vector<1x28x96xbf16>
    %26 = vector.shape_cast %25 : vector<1x28x96xbf16> to vector<28x96xbf16>
    %c4_26 = arith.constant 4 : index
    %c0_27 = arith.constant 0 : index
    %c0_28 = arith.constant 0 : index
    %27 = vector.load %arg2[%c4_26, %c0_27, %c0_28] : memref<5x96x168xbf16, #tpu.memory_space<vmem>>, vector<1x96x168xbf16>
    %28 = vector.shape_cast %27 : vector<1x96x168xbf16> to vector<96x168xbf16>
    %cst_29 = arith.constant dense<0.000000e+00> : vector<28x168xf32>
    %29 = tpu.matmul %26, %28, %cst_29 {dimension_numbers = #tpu.dot_dimension_numbers<[1], [0], [0], [1], [0, 0, 1, 1], [], []>} : vector<28x96xbf16>, vector<96x168xbf16>, vector<28x168xf32> -> vector<28x168xf32>
    %30 = arith.addf %24, %29 : vector<28x168xf32>
    %c0_30 = arith.constant 0 : index
    %c0_31 = arith.constant 0 : index
    %31 = vector.load %arg3[%c0_30, %c0_31] : memref<1x168xf32, #tpu.memory_space<vmem>>, vector<1x168xf32>
    %32 = vector.broadcast %31 : vector<1x168xf32> to vector<28x168xf32>
    %33 = arith.addf %30, %32 : vector<28x168xf32>
    %cst_32 = arith.constant 0.000000e+00 : f32
    %34 = vector.broadcast %cst_32 : f32 to vector<28x168xf32>
    %35 = arith.maximumf %33, %34 : vector<28x168xf32>
    %36 = arith.truncf %35 : vector<28x168xf32> to vector<28x168xbf16>
    %c0_33 = arith.constant 0 : index
    %c0_34 = arith.constant 0 : index
    %c0_35 = arith.constant 0 : index
    %37 = vector.load %arg4[%c0_33, %c0_34, %c0_35] : memref<1x28x168xbf16, #tpu.memory_space<vmem>>, vector<1x28x168xbf16>
    %38 = vector.shape_cast %37 : vector<1x28x168xbf16> to vector<28x168xbf16>
    %39 = vector.shape_cast %36 : vector<28x168xbf16> to vector<1x28x168xbf16>
    tpu.vector_store %arg4[%c0_33, %c0_34, %c0_35], %39 {strides = array<i32>} : memref<1x28x168xbf16, #tpu.memory_space<vmem>>, vector<1x28x168xbf16>,
    return
  }
  func.func @transform_0(%arg0: i32) -> (i32, i32, i32) {
    %c0_i32 = arith.constant 0 : i32
    %c0_i32_0 = arith.constant 0 : i32
    %c0_i32_1 = arith.constant 0 : i32
    return %arg0, %c0_i32, %c0_i32_0 : i32, i32, i32
  }
  func.func @transform_1(%arg0: i32) -> (i32, i32, i32) {
    %c0_i32 = arith.constant 0 : i32
    %c0_i32_0 = arith.constant 0 : i32
    %c0_i32_1 = arith.constant 0 : i32
    %c0_i32_2 = arith.constant 0 : i32
    return %c0_i32, %c0_i32_0, %c0_i32_1 : i32, i32, i32
  }
  func.func @transform_2(%arg0: i32) -> (i32, i32) {
    %c0_i32 = arith.constant 0 : i32
    %c0_i32_0 = arith.constant 0 : i32
    %c0_i32_1 = arith.constant 0 : i32
    return %c0_i32, %c0_i32_0 : i32, i32
  }
  func.func @transform_3(%arg0: i32) -> (i32, i32, i32) {
    %c0_i32 = arith.constant 0 : i32
    %c0_i32_0 = arith.constant 0 : i32
    %c0_i32_1 = arith.constant 0 : i32
    return %arg0, %c0_i32, %c0_i32_0 : i32, i32, i32
  }
}

module attributes {stable_mosaic.version = 11 : i64} {
  func.func @_conv_rows_kernel(%arg0: i32, %arg1: memref<1x14x84xbf16, #tpu.memory_space<vmem>>, %arg2: memref<5x84x160xbf16, #tpu.memory_space<vmem>>, %arg3: memref<1x160xf32, #tpu.memory_space<vmem>>, %arg4: memref<1x10x160xbf16, #tpu.memory_space<vmem>>) attributes {dimension_semantics = [#tpu.dimension_semantics<parallel>], iteration_bounds = array<i64: 2>, scalar_prefetch = 0 : i64, scratch_operands = 0 : i64, tpu.core_type = #tpu.core_type<tc>, window_params = [{transform_indices = @transform_0, window_bounds = array<i64: 1, 14, 84>}, {pipeline_mode = #tpu.pipeline_mode<synchronous>, transform_indices = @transform_1, window_bounds = array<i64: 5, 84, 160>}, {pipeline_mode = #tpu.pipeline_mode<synchronous>, transform_indices = @transform_2, window_bounds = array<i64: 1, 160>}, {transform_indices = @transform_3, window_bounds = array<i64: 1, 10, 160>}]} {
    %cst = arith.constant 0.000000e+00 : f32
    %0 = vector.broadcast %cst : f32 to vector<10x160xf32>
    %c0 = arith.constant 0 : index
    %c0_0 = arith.constant 0 : index
    %c0_1 = arith.constant 0 : index
    %1 = vector.load %arg1[%c0, %c0_0, %c0_1] : memref<1x14x84xbf16, #tpu.memory_space<vmem>>, vector<1x10x84xbf16>
    %2 = vector.shape_cast %1 : vector<1x10x84xbf16> to vector<10x84xbf16>
    %c0_2 = arith.constant 0 : index
    %c0_3 = arith.constant 0 : index
    %c0_4 = arith.constant 0 : index
    %3 = vector.load %arg2[%c0_2, %c0_3, %c0_4] : memref<5x84x160xbf16, #tpu.memory_space<vmem>>, vector<1x84x160xbf16>
    %4 = vector.shape_cast %3 : vector<1x84x160xbf16> to vector<84x160xbf16>
    %cst_5 = arith.constant dense<0.000000e+00> : vector<10x160xf32>
    %5 = tpu.matmul %2, %4, %cst_5 {dimension_numbers = #tpu.dot_dimension_numbers<[1], [0], [0], [1], [0, 0, 1, 1], [], []>} : vector<10x84xbf16>, vector<84x160xbf16>, vector<10x160xf32> -> vector<10x160xf32>
    %6 = arith.addf %0, %5 : vector<10x160xf32>
    %c0_6 = arith.constant 0 : index
    %c1 = arith.constant 1 : index
    %c0_7 = arith.constant 0 : index
    %7 = vector.load %arg1[%c0_6, %c1, %c0_7] : memref<1x14x84xbf16, #tpu.memory_space<vmem>>, vector<1x10x84xbf16>
    %8 = vector.shape_cast %7 : vector<1x10x84xbf16> to vector<10x84xbf16>
    %c1_8 = arith.constant 1 : index
    %c0_9 = arith.constant 0 : index
    %c0_10 = arith.constant 0 : index
    %9 = vector.load %arg2[%c1_8, %c0_9, %c0_10] : memref<5x84x160xbf16, #tpu.memory_space<vmem>>, vector<1x84x160xbf16>
    %10 = vector.shape_cast %9 : vector<1x84x160xbf16> to vector<84x160xbf16>
    %cst_11 = arith.constant dense<0.000000e+00> : vector<10x160xf32>
    %11 = tpu.matmul %8, %10, %cst_11 {dimension_numbers = #tpu.dot_dimension_numbers<[1], [0], [0], [1], [0, 0, 1, 1], [], []>} : vector<10x84xbf16>, vector<84x160xbf16>, vector<10x160xf32> -> vector<10x160xf32>
    %12 = arith.addf %6, %11 : vector<10x160xf32>
    %c0_12 = arith.constant 0 : index
    %c2 = arith.constant 2 : index
    %c0_13 = arith.constant 0 : index
    %13 = vector.load %arg1[%c0_12, %c2, %c0_13] : memref<1x14x84xbf16, #tpu.memory_space<vmem>>, vector<1x10x84xbf16>
    %14 = vector.shape_cast %13 : vector<1x10x84xbf16> to vector<10x84xbf16>
    %c2_14 = arith.constant 2 : index
    %c0_15 = arith.constant 0 : index
    %c0_16 = arith.constant 0 : index
    %15 = vector.load %arg2[%c2_14, %c0_15, %c0_16] : memref<5x84x160xbf16, #tpu.memory_space<vmem>>, vector<1x84x160xbf16>
    %16 = vector.shape_cast %15 : vector<1x84x160xbf16> to vector<84x160xbf16>
    %cst_17 = arith.constant dense<0.000000e+00> : vector<10x160xf32>
    %17 = tpu.matmul %14, %16, %cst_17 {dimension_numbers = #tpu.dot_dimension_numbers<[1], [0], [0], [1], [0, 0, 1, 1], [], []>} : vector<10x84xbf16>, vector<84x160xbf16>, vector<10x160xf32> -> vector<10x160xf32>
    %18 = arith.addf %12, %17 : vector<10x160xf32>
    %c0_18 = arith.constant 0 : index
    %c3 = arith.constant 3 : index
    %c0_19 = arith.constant 0 : index
    %19 = vector.load %arg1[%c0_18, %c3, %c0_19] : memref<1x14x84xbf16, #tpu.memory_space<vmem>>, vector<1x10x84xbf16>
    %20 = vector.shape_cast %19 : vector<1x10x84xbf16> to vector<10x84xbf16>
    %c3_20 = arith.constant 3 : index
    %c0_21 = arith.constant 0 : index
    %c0_22 = arith.constant 0 : index
    %21 = vector.load %arg2[%c3_20, %c0_21, %c0_22] : memref<5x84x160xbf16, #tpu.memory_space<vmem>>, vector<1x84x160xbf16>
    %22 = vector.shape_cast %21 : vector<1x84x160xbf16> to vector<84x160xbf16>
    %cst_23 = arith.constant dense<0.000000e+00> : vector<10x160xf32>
    %23 = tpu.matmul %20, %22, %cst_23 {dimension_numbers = #tpu.dot_dimension_numbers<[1], [0], [0], [1], [0, 0, 1, 1], [], []>} : vector<10x84xbf16>, vector<84x160xbf16>, vector<10x160xf32> -> vector<10x160xf32>
    %24 = arith.addf %18, %23 : vector<10x160xf32>
    %c0_24 = arith.constant 0 : index
    %c4 = arith.constant 4 : index
    %c0_25 = arith.constant 0 : index
    %25 = vector.load %arg1[%c0_24, %c4, %c0_25] : memref<1x14x84xbf16, #tpu.memory_space<vmem>>, vector<1x10x84xbf16>
    %26 = vector.shape_cast %25 : vector<1x10x84xbf16> to vector<10x84xbf16>
    %c4_26 = arith.constant 4 : index
    %c0_27 = arith.constant 0 : index
    %c0_28 = arith.constant 0 : index
    %27 = vector.load %arg2[%c4_26, %c0_27, %c0_28] : memref<5x84x160xbf16, #tpu.memory_space<vmem>>, vector<1x84x160xbf16>
    %28 = vector.shape_cast %27 : vector<1x84x160xbf16> to vector<84x160xbf16>
    %cst_29 = arith.constant dense<0.000000e+00> : vector<10x160xf32>
    %29 = tpu.matmul %26, %28, %cst_29 {dimension_numbers = #tpu.dot_dimension_numbers<[1], [0], [0], [1], [0, 0, 1, 1], [], []>} : vector<10x84xbf16>, vector<84x160xbf16>, vector<10x160xf32> -> vector<10x160xf32>
    %30 = arith.addf %24, %29 : vector<10x160xf32>
    %c0_30 = arith.constant 0 : index
    %c0_31 = arith.constant 0 : index
    %31 = vector.load %arg3[%c0_30, %c0_31] : memref<1x160xf32, #tpu.memory_space<vmem>>, vector<1x160xf32>
    %32 = vector.broadcast %31 : vector<1x160xf32> to vector<10x160xf32>
    %33 = arith.addf %30, %32 : vector<10x160xf32>
    %cst_32 = arith.constant 0.000000e+00 : f32
    %34 = vector.broadcast %cst_32 : f32 to vector<10x160xf32>
    %35 = arith.maximumf %33, %34 : vector<10x160xf32>
    %36 = arith.truncf %35 : vector<10x160xf32> to vector<10x160xbf16>
    %c0_33 = arith.constant 0 : index
    %c0_34 = arith.constant 0 : index
    %c0_35 = arith.constant 0 : index
    %37 = vector.load %arg4[%c0_33, %c0_34, %c0_35] : memref<1x10x160xbf16, #tpu.memory_space<vmem>>, vector<1x10x160xbf16>
    %38 = vector.shape_cast %37 : vector<1x10x160xbf16> to vector<10x160xbf16>
    %39 = vector.shape_cast %36 : vector<10x160xbf16> to vector<1x10x160xbf16>
    tpu.vector_store %arg4[%c0_33, %c0_34, %c0_35], %39 {strides = array<i32>} : memref<1x10x160xbf16, #tpu.memory_space<vmem>>, vector<1x10x160xbf16>,
    return
  }
  func.func @transform_0(%arg0: i32) -> (i32, i32, i32) {
    %c0_i32 = arith.constant 0 : i32
    %c0_i32_0 = arith.constant 0 : i32
    %c0_i32_1 = arith.constant 0 : i32
    return %arg0, %c0_i32, %c0_i32_0 : i32, i32, i32
  }
  func.func @transform_1(%arg0: i32) -> (i32, i32, i32) {
    %c0_i32 = arith.constant 0 : i32
    %c0_i32_0 = arith.constant 0 : i32
    %c0_i32_1 = arith.constant 0 : i32
    %c0_i32_2 = arith.constant 0 : i32
    return %c0_i32, %c0_i32_0, %c0_i32_1 : i32, i32, i32
  }
  func.func @transform_2(%arg0: i32) -> (i32, i32) {
    %c0_i32 = arith.constant 0 : i32
    %c0_i32_0 = arith.constant 0 : i32
    %c0_i32_1 = arith.constant 0 : i32
    return %c0_i32, %c0_i32_0 : i32, i32
  }
  func.func @transform_3(%arg0: i32) -> (i32, i32, i32) {
    %c0_i32 = arith.constant 0 : i32
    %c0_i32_0 = arith.constant 0 : i32
    %c0_i32_1 = arith.constant 0 : i32
    return %arg0, %c0_i32, %c0_i32_0 : i32, i32, i32
  }
}

module attributes {stable_mosaic.version = 11 : i64} {
  func.func @_fc_fused_kernel(%arg0: i32, %arg1: memref<16x400xbf16, #tpu.memory_space<vmem>>, %arg2: memref<400x128xbf16, #tpu.memory_space<vmem>>, %arg3: memref<1x128xf32, #tpu.memory_space<vmem>>, %arg4: memref<128x128xbf16, #tpu.memory_space<vmem>>, %arg5: memref<1x128xf32, #tpu.memory_space<vmem>>, %arg6: memref<128x128xbf16, #tpu.memory_space<vmem>>, %arg7: memref<1x128xf32, #tpu.memory_space<vmem>>, %arg8: memref<16x128xf32, #tpu.memory_space<vmem>>) attributes {dimension_semantics = [#tpu.dimension_semantics<parallel>], iteration_bounds = array<i64: 1>, scalar_prefetch = 0 : i64, scratch_operands = 0 : i64, tpu.core_type = #tpu.core_type<tc>, window_params = [{transform_indices = @transform_0, window_bounds = array<i64: 16, 400>}, {pipeline_mode = #tpu.pipeline_mode<synchronous>, transform_indices = @transform_1, window_bounds = array<i64: 400, 128>}, {pipeline_mode = #tpu.pipeline_mode<synchronous>, transform_indices = @transform_2, window_bounds = array<i64: 1, 128>}, {pipeline_mode = #tpu.pipeline_mode<synchronous>, transform_indices = @transform_3, window_bounds = array<i64: 128, 128>}, {pipeline_mode = #tpu.pipeline_mode<synchronous>, transform_indices = @transform_4, window_bounds = array<i64: 1, 128>}, {pipeline_mode = #tpu.pipeline_mode<synchronous>, transform_indices = @transform_5, window_bounds = array<i64: 128, 128>}, {pipeline_mode = #tpu.pipeline_mode<synchronous>, transform_indices = @transform_6, window_bounds = array<i64: 1, 128>}, {transform_indices = @transform_7, window_bounds = array<i64: 16, 128>}]} {
    %c0 = arith.constant 0 : index
    %c0_0 = arith.constant 0 : index
    %0 = vector.load %arg1[%c0, %c0_0] : memref<16x400xbf16, #tpu.memory_space<vmem>>, vector<16x400xbf16>
    %c0_1 = arith.constant 0 : index
    %c0_2 = arith.constant 0 : index
    %1 = vector.load %arg2[%c0_1, %c0_2] : memref<400x128xbf16, #tpu.memory_space<vmem>>, vector<400x128xbf16>
    %cst = arith.constant dense<0.000000e+00> : vector<16x128xf32>
    %2 = tpu.matmul %0, %1, %cst {dimension_numbers = #tpu.dot_dimension_numbers<[1], [0], [0], [1], [0, 0, 1, 1], [], []>} : vector<16x400xbf16>, vector<400x128xbf16>, vector<16x128xf32> -> vector<16x128xf32>
    %c0_3 = arith.constant 0 : index
    %c0_4 = arith.constant 0 : index
    %3 = vector.load %arg3[%c0_3, %c0_4] : memref<1x128xf32, #tpu.memory_space<vmem>>, vector<1x128xf32>
    %4 = vector.broadcast %3 : vector<1x128xf32> to vector<16x128xf32>
    %5 = arith.addf %2, %4 : vector<16x128xf32>
    %cst_5 = arith.constant 0.000000e+00 : f32
    %6 = vector.broadcast %cst_5 : f32 to vector<16x128xf32>
    %7 = arith.maximumf %5, %6 : vector<16x128xf32>
    %8 = arith.truncf %7 : vector<16x128xf32> to vector<16x128xbf16>
    %c0_6 = arith.constant 0 : index
    %c0_7 = arith.constant 0 : index
    %9 = vector.load %arg4[%c0_6, %c0_7] : memref<128x128xbf16, #tpu.memory_space<vmem>>, vector<128x128xbf16>
    %cst_8 = arith.constant dense<0.000000e+00> : vector<16x128xf32>
    %10 = tpu.matmul %8, %9, %cst_8 {dimension_numbers = #tpu.dot_dimension_numbers<[1], [0], [0], [1], [0, 0, 1, 1], [], []>} : vector<16x128xbf16>, vector<128x128xbf16>, vector<16x128xf32> -> vector<16x128xf32>
    %c0_9 = arith.constant 0 : index
    %c0_10 = arith.constant 0 : index
    %11 = vector.load %arg5[%c0_9, %c0_10] : memref<1x128xf32, #tpu.memory_space<vmem>>, vector<1x128xf32>
    %12 = vector.broadcast %11 : vector<1x128xf32> to vector<16x128xf32>
    %13 = arith.addf %10, %12 : vector<16x128xf32>
    %cst_11 = arith.constant 0.000000e+00 : f32
    %14 = vector.broadcast %cst_11 : f32 to vector<16x128xf32>
    %15 = arith.maximumf %13, %14 : vector<16x128xf32>
    %16 = arith.truncf %15 : vector<16x128xf32> to vector<16x128xbf16>
    %c0_12 = arith.constant 0 : index
    %c0_13 = arith.constant 0 : index
    %17 = vector.load %arg6[%c0_12, %c0_13] : memref<128x128xbf16, #tpu.memory_space<vmem>>, vector<128x128xbf16>
    %cst_14 = arith.constant dense<0.000000e+00> : vector<16x128xf32>
    %18 = tpu.matmul %16, %17, %cst_14 {dimension_numbers = #tpu.dot_dimension_numbers<[1], [0], [0], [1], [0, 0, 1, 1], [], []>} : vector<16x128xbf16>, vector<128x128xbf16>, vector<16x128xf32> -> vector<16x128xf32>
    %c0_15 = arith.constant 0 : index
    %c0_16 = arith.constant 0 : index
    %19 = vector.load %arg7[%c0_15, %c0_16] : memref<1x128xf32, #tpu.memory_space<vmem>>, vector<1x128xf32>
    %20 = vector.broadcast %19 : vector<1x128xf32> to vector<16x128xf32>
    %21 = arith.addf %18, %20 : vector<16x128xf32>
    %c0_17 = arith.constant 0 : index
    %c0_18 = arith.constant 0 : index
    %22 = vector.load %arg8[%c0_17, %c0_18] : memref<16x128xf32, #tpu.memory_space<vmem>>, vector<16x128xf32>
    tpu.vector_store %arg8[%c0_17, %c0_18], %21 {strides = array<i32>} : memref<16x128xf32, #tpu.memory_space<vmem>>, vector<16x128xf32>,
    return
  }
  func.func @transform_0(%arg0: i32) -> (i32, i32) {
    %c0_i32 = arith.constant 0 : i32
    %c0_i32_0 = arith.constant 0 : i32
    return %arg0, %c0_i32 : i32, i32
  }
  func.func @transform_1(%arg0: i32) -> (i32, i32) {
    %c0_i32 = arith.constant 0 : i32
    %c0_i32_0 = arith.constant 0 : i32
    %c0_i32_1 = arith.constant 0 : i32
    return %c0_i32, %c0_i32_0 : i32, i32
  }
  func.func @transform_2(%arg0: i32) -> (i32, i32) {
    %c0_i32 = arith.constant 0 : i32
    %c0_i32_0 = arith.constant 0 : i32
    %c0_i32_1 = arith.constant 0 : i32
    return %c0_i32, %c0_i32_0 : i32, i32
  }
  func.func @transform_3(%arg0: i32) -> (i32, i32) {
    %c0_i32 = arith.constant 0 : i32
    %c0_i32_0 = arith.constant 0 : i32
    %c0_i32_1 = arith.constant 0 : i32
    return %c0_i32, %c0_i32_0 : i32, i32
  }
  func.func @transform_4(%arg0: i32) -> (i32, i32) {
    %c0_i32 = arith.constant 0 : i32
    %c0_i32_0 = arith.constant 0 : i32
    %c0_i32_1 = arith.constant 0 : i32
    return %c0_i32, %c0_i32_0 : i32, i32
  }
  func.func @transform_5(%arg0: i32) -> (i32, i32) {
    %c0_i32 = arith.constant 0 : i32
    %c0_i32_0 = arith.constant 0 : i32
    %c0_i32_1 = arith.constant 0 : i32
    return %c0_i32, %c0_i32_0 : i32, i32
  }
  func.func @transform_6(%arg0: i32) -> (i32, i32) {
    %c0_i32 = arith.constant 0 : i32
    %c0_i32_0 = arith.constant 0 : i32
    %c0_i32_1 = arith.constant 0 : i32
    return %c0_i32, %c0_i32_0 : i32, i32
  }
  func.func @transform_7(%arg0: i32) -> (i32, i32) {
    %c0_i32 = arith.constant 0 : i32
    %c0_i32_0 = arith.constant 0 : i32
    return %arg0, %c0_i32 : i32, i32
  }
}

</mosaic_0001>

<llo_original>
// kernel: net_forward.3
$region0: #{net_forward.3}
  #allocation0 [shape = 'u32[]', space=smem, size = 0x4, offset = 0x4, fixed_abs, tag = 'smem constant byte address 0x4 - core index']
  #allocation1 [shape = 'u32[72,128]{1,0:T(1,128)}', space=vmem, size = 0x9000, scoped, tag = 'internal scratch']
  %s0 = inlined_call_operand.vmem [shape: bf16[2,32,96], index: 0, kind: input, shape index: {}]
  %s1 = inlined_call_operand.vmem [shape: bf16[5,96,168], index: 1, kind: input, shape index: {}]
  %s2 = inlined_call_operand.vmem [shape: f32[1,168], index: 2, kind: input, shape index: {}]
  %s3 = inlined_call_operand.vmem [shape: bf16[2,28,168], index: 3, kind: output, shape index: {}]
  %s4 = sld [smem:[#allocation0]]
  $region45: #{net_forward.3} parent=0
    _
  %s6 = ssub.s32 1, %s4
  %s7 = scalar_select 0, %s6, %s4
  loop: start=0, step=1, limit=4
  $region2: #{net_forward.3} parent=0 // loop_pre_header
    _
  $region3: #{net_forward.3} parent=0 // loop_header
    %s9 = sphi 0, %s13
    %p10 = scmp.ge.s32.totalorder %s9, 4
    %s19 = sphi 0, %s21
    %s22 = sphi 0, %s19
    %s23 = sphi 0, %s22
    %s39 = sphi 0, %s23
    %s43 = sphi 0, %s43
    %s45 = sphi 0, %s43
    %s46 = sphi 0, %s45
    %s60 = sphi 0, %s46
    %s64 = sphi 0, %s64
    %s66 = sphi 0, %s64
    %s67 = sphi 0, %s66
    %s81 = sphi 0, %s67
    %s87 = sphi 0, %s89
    %s90 = sphi 0, %s87
    %s91 = sphi 0, %s90
    %s107 = sphi 0, %s91
  $region4: #{net_forward.3} parent=0 // loop_header_branch
    %12 = sbr.rel (%p10) target = $region8
  $region5: #{net_forward.3} parent=0 // loop_body
    %s14 = ssub.s32 %s9, 1
    %s15 = ssub.s32 %s9, 2
    %s16 = sadd.s32 %s9, 1
    %s17 = ssub.s32 %s9, %s16
    %p18 = scmp.eq.s32.totalorder %s17, 0
    %s20 = sadd.s32 %s19, 1
    %s21 = scalar_select %p18, %s19, %s20
    %p24 = pneg %p18
    %p25 = scmp.eq.s32.totalorder %s9, 1
    %p26 = por %p24, %p25
    %p27 = scmp.ne.s32.totalorder %s19, %s22
    %p28 = scmp.eq.s32.totalorder %s9, 0
    %p29 = por %p27, %p28
    %p30 = scmp.ne.s32.totalorder %s19, %s22
    %p31 = scmp.eq.s32.totalorder %s14, 1
    %p32 = por %p30, %p31
    %p33 = scmp.ne.s32.totalorder %s22, %s23
    %p34 = scmp.eq.s32.totalorder %s14, 0
    %p35 = por %p33, %p34
    %p36 = scmp.ne.s32.totalorder %s22, %s23
    %p37 = scmp.eq.s32.totalorder %s15, 1
    %p38 = por %p36, %p37
    %p40 = scmp.ne.s32.totalorder %s23, %s39
    %p41 = scmp.eq.s32.totalorder %s15, 0
    %p42 = por %p40, %p41
    %s44 = sadd.s32 %s43, 1
    %p47 = scmp.eq.s32.totalorder %s9, 1
    %p48 = scmp.ne.s32.totalorder %s43, %s45
    %p49 = scmp.eq.s32.totalorder %s9, 0
    %p50 = por %p48, %p49
    %p51 = scmp.ne.s32.totalorder %s43, %s45
    %p52 = scmp.eq.s32.totalorder %s14, 1
    %p53 = por %p51, %p52
    %p54 = scmp.ne.s32.totalorder %s45, %s46
    %p55 = scmp.eq.s32.totalorder %s14, 0
    %p56 = por %p54, %p55
    %p57 = scmp.ne.s32.totalorder %s45, %s46
    %p58 = scmp.eq.s32.totalorder %s15, 1
    %p59 = por %p57, %p58
    %p61 = scmp.ne.s32.totalorder %s46, %s60
    %p62 = scmp.eq.s32.totalorder %s15, 0
    %p63 = por %p61, %p62
    %s65 = sadd.s32 %s64, 1
    %p68 = scmp.eq.s32.totalorder %s9, 1
    %p69 = scmp.ne.s32.totalorder %s64, %s66
    %p70 = scmp.eq.s32.totalorder %s9, 0
    %p71 = por %p69, %p70
    %p72 = scmp.ne.s32.totalorder %s64, %s66
    %p73 = scmp.eq.s32.totalorder %s14, 1
    %p74 = por %p72, %p73
    %p75 = scmp.ne.s32.totalorder %s66, %s67
    %p76 = scmp.eq.s32.totalorder %s14, 0
    %p77 = por %p75, %p76
    %p78 = scmp.ne.s32.totalorder %s66, %s67
    %p79 = scmp.eq.s32.totalorder %s15, 1
    %p80 = por %p78, %p79
    %p82 = scmp.ne.s32.totalorder %s67, %s81
    %p83 = scmp.eq.s32.totalorder %s15, 0
    %p84 = por %p82, %p83
    %s85 = ssub.s32 %s9, %s16
    %p86 = scmp.eq.s32.totalorder %s85, 0
    %s88 = sadd.s32 %s87, 1
    %s89 = scalar_select %p86, %s87, %s88
    %p92 = pneg %p86
    %p93 = scmp.eq.s32.totalorder %s9, 1
    %p94 = por %p92, %p93
    %p95 = scmp.ne.s32.totalorder %s87, %s90
    %p96 = scmp.eq.s32.totalorder %s9, 0
    %p97 = por %p95, %p96
    %p98 = scmp.ne.s32.totalorder %s87, %s90
    %p99 = scmp.eq.s32.totalorder %s14, 1
    %p100 = por %p98, %p99
    %p101 = scmp.ne.s32.totalorder %s90, %s91
    %p102 = scmp.eq.s32.totalorder %s14, 0
    %p103 = por %p101, %p102
    %p104 = scmp.ne.s32.totalorder %s90, %s91
    %p105 = scmp.eq.s32.totalorder %s15, 1
    %p106 = por %p104, %p105
    %p108 = scmp.ne.s32.totalorder %s91, %s107
    %p109 = scmp.eq.s32.totalorder %s15, 0
    %p110 = por %p108, %p109
    %p111 = scmp.le.s32.totalorder 1, %s9
    %p112 = scmp.lt.s32.totalorder %s9, 3
    %p113 = pnand %p111, %p112
    %p114 = pneg %p113
    // Predicated region
    $region9: #{net_forward.3} parent=5 // pred_check
      _
    $region10: #{net_forward.3} parent=5 // pred_check_branch
      %116 = sbr.rel (%p113) target = $region12
    $region11: #{net_forward.3} parent=5 // pred_region
      %s117 = ssub.s32 %s9, 1
      // Predicated region
      $region13: #{net_forward.3} parent=11 // pred_check
        %p118 = pneg %p56
      $region14: #{net_forward.3} parent=11 // pred_check_branch
        %120 = sbr.rel (%p118) target = $region16
      $region15: #{net_forward.3} parent=11 // pred_region
        _
      $region16: #{net_forward.3} parent=11 // pred_fallthru
        _
      // Predicated region
      $region17: #{net_forward.3} parent=11 // pred_check
        %p121 = pneg %p77
      $region18: #{net_forward.3} parent=11 // pred_check_branch
        %123 = sbr.rel (%p121) target = $region20
      $region19: #{net_forward.3} parent=11 // pred_region
        _
      $region20: #{net_forward.3} parent=11 // pred_fallthru
        _
    $region12: #{net_forward.3} parent=5 // pred_fallthru
      _
    %p124 = scmp.lt.s32.totalorder %s9, 2
    // Predicated region
    $region21: #{net_forward.3} parent=5 // pred_check
      %p125 = pneg %p124
    $region22: #{net_forward.3} parent=5 // pred_check_branch
      %127 = sbr.rel (%p125) target = $region24
    $region23: #{net_forward.3} parent=5 // pred_region
      // Predicated region
      $region25: #{net_forward.3} parent=23 // pred_check
        %p128 = pneg %p29
      $region26: #{net_forward.3} parent=23 // pred_check_branch
        %130 = sbr.rel (%p128) target = $region28
      $region27: #{net_forward.3} parent=23 // pred_region
        %p131 = scmp.lt.s32.totalorder %s9, 1
        %s132 = scalar_select %p131, %s9, 1
        %s133 = smul.addr %s132, 4
        %s134 = smul.addr %s133, 4
        %s135 = scalar_lea.vmem %s0, %s134
      $region28: #{net_forward.3} parent=23 // pred_fallthru
        _
    $region24: #{net_forward.3} parent=5 // pred_fallthru
      _
    %p136 = scmp.le.s32.totalorder 1, %s9
    %p137 = scmp.lt.s32.totalorder %s9, 3
    %p138 = pnand %p136, %p137
    %p139 = pneg %p138
    // Predicated region
    $region29: #{net_forward.3} parent=5 // pred_check
      _
    $region30: #{net_forward.3} parent=5 // pred_check_branch
      %141 = sbr.rel (%p138) target = $region32
    $region31: #{net_forward.3} parent=5 // pred_region
      %s142 = ssub.s32 %s9, 1
      %p143 = scmp.lt.s32.totalorder %s14, 1
      %s144 = scalar_select %p143, %s14, 1
      %s145 = smul.addr %s144, 4
      %s146 = smul.addr %s145, 4
      %s147 = scalar_lea.vmem %s0, %s146
      %p148 = pneg %p35
      %p149 = pneg %p32
      %p150 = pneg %p56
      %p151 = pneg %p53
      %p152 = pneg %p77
      %p153 = pneg %p74
      %p154 = pneg %p103
      %p155 = pneg %p100
      %p156 = scmp.lt.s32.totalorder %s14, 1
      %s157 = scalar_select %p156, %s14, 1
      %s158 = smul.addr %s157, 8
      %s159 = smul.addr %s158, 4
      %s160 = scalar_lea.vmem %s3, %s159
      %p161 = scmp.lt.s32.totalorder %s14, 1
      %s162 = scalar_select %p161, %s14, 1
      %s163 = smul.addr %s162, 4
      %s164 = smul.addr %s163, 4
      %s165 = scalar_lea.vmem %s0, %s164
      %p166 = scmp.lt.s32.totalorder %s14, 1
      %s167 = scalar_select %p166, %s14, 1
      %s168 = smul.addr %s167, 8
      %s169 = smul.addr %s168, 4
      %s170 = scalar_lea.vmem %s3, %s169
      %v172 = vld [vmem:[%s165] sm:$0xf]
      %v173 = vld [vmem:[%s165 + $0x4] sm:$0xf]
      %v174 = vld [vmem:[%s165 + $0x8] sm:$0xf]
      %v175 = vld [vmem:[%s165 + $0xc] sm:$0x3]
      %v176 = vld [vmem:[%s1] sm:$0xff]
      %v177 = vld [vmem:[%s1 + $0x8] sm:$0xff]
      %v178 = vld [vmem:[%s1 + $0x10] sm:$0xff]
      %v179 = vld [vmem:[%s1 + $0x18] sm:$0xff]
      %v180 = vld [vmem:[%s1 + $0x20] sm:$0xff]
      %v181 = vld [vmem:[%s1 + $0x28] sm:$0xff]
      %v182 = vld [vmem:[%s1 + $0x30] sm:$0xff]
      %v183 = vld [vmem:[%s1 + $0x38] sm:$0xff]
      %v184 = vld [vmem:[%s1 + $0x40] sm:$0xff]
      %v185 = vld [vmem:[%s1 + $0x48] sm:$0xff]
      %v186 = vld [vmem:[%s1 + $0x50] sm:$0xff]
      %v187 = vld [vmem:[%s1 + $0x58] sm:$0xff]
      %v188 = vld [vmem:[%s165 + $0xc] sm:$0x7]
      %s189 = scalar_lea.vmem %s1, 96
      %v190 = vld [vmem:[%s189] sm:$0xff]
      %v191 = vld [vmem:[%s189 + $0x8] sm:$0xff]
      %v192 = vld [vmem:[%s189 + $0x10] sm:$0xff]
      %v193 = vld [vmem:[%s189 + $0x18] sm:$0xff]
      %v194 = vld [vmem:[%s189 + $0x20] sm:$0xff]
      %v195 = vld [vmem:[%s189 + $0x28] sm:$0xff]
      %v196 = vld [vmem:[%s189 + $0x30] sm:$0xff]
      %v197 = vld [vmem:[%s189 + $0x38] sm:$0xff]
      %v198 = vld [vmem:[%s189 + $0x40] sm:$0xff]
      %v199 = vld [vmem:[%s189 + $0x48] sm:$0xff]
      %v200 = vld [vmem:[%s189 + $0x50] sm:$0xff]
      %v201 = vld [vmem:[%s189 + $0x58] sm:$0xff]
      %v206 = vunpack.c.l.b16 %v172
      %v207 = vunpack.c.l.b16 %v173
      %v208 = vunpack.c.l.b16 %v174
      %v209 = vunpack.c.l.b16 %v188
      %v210 = vpack.c.b16 %v207, %v206
      %v211 = vpack.c.b16 %v209, %v208
      %vm212 = vsmask.f32 7424
      %v214 = vshrl.u32 %v210, 16
      %v216 = vshll.u32 %v210, 16
      %v218 = vrot.slane %v216, 1
      %v219 = vor.u32 %v214, %v218
      %v221 = vshll.u32 %v211, 16
      %v223 = vrot.slane %v221, 1
      %v224 = vsel %vm212, %v219, %v223
      %v225 = vshrl.u32 %v211, 16
      %v227 = vor.u32 %v225, %v223
      %v240 = vunpack.c.l.b16 %v190
      %v241 = vunpack.c.h.b16 %v190
      %v242 = vunpack.c.l.b16 %v191
      %v243 = vunpack.c.h.b16 %v191
      %v244 = vunpack.c.l.b16 %v192
      %v245 = vunpack.c.h.b16 %v192
      %v246 = vunpack.c.l.b16 %v193
      %v247 = vunpack.c.h.b16 %v193
      %v248 = vunpack.c.l.b16 %v194
      %v249 = vunpack.c.h.b16 %v194
      %v250 = vunpack.c.l.b16 %v195
      %v251 = vunpack.c.h.b16 %v195
      %v252 = vunpack.c.l.b16 %v196
      %v253 = vunpack.c.h.b16 %v196
      %v254 = vunpack.c.l.b16 %v197
      %v255 = vunpack.c.h.b16 %v197
      %v256 = vunpack.c.l.b16 %v198
      %v257 = vunpack.c.h.b16 %v198
      %v258 = vunpack.c.l.b16 %v199
      %v259 = vunpack.c.h.b16 %v199
      %v260 = vunpack.c.l.b16 %v200
      %v261 = vunpack.c.h.b16 %v200
      %v262 = vunpack.c.l.b16 %v201
      %v263 = vunpack.c.h.b16 %v201
      %v264 = vpack.c.b16 %v242, %v240
      %v265 = vpack.c.b16 %v243, %v241
      %v266 = vpack.c.b16 %v246, %v244
      %v267 = vpack.c.b16 %v247, %v245
      %v268 = vpack.c.b16 %v250, %v248
      %v269 = vpack.c.b16 %v251, %v249
      %v270 = vpack.c.b16 %v254, %v252
      %v271 = vpack.c.b16 %v255, %v253
      %v272 = vpack.c.b16 %v258, %v256
      %v273 = vpack.c.b16 %v259, %v257
      %v274 = vpack.c.b16 %v262, %v260
      %v275 = vpack.c.b16 %v263, %v261
      %vm288 = vcmask 785408
      %v290 = vsel %vm288, %v224, 0
      %v293 = vsel %vm288, %v227, 0
      %295 = vmatpush.bf16.msra.mxu0 0
      %296 = vmatpush.bf16.msra.mxu0 0
      %297 = vmatpush.bf16.msra.mxu0 %v274
      %298 = vmatpush.bf16.msra.mxu0 %v272
      %299 = vmatpush.bf16.msra.mxu0 %v270
      %300 = vmatpush.bf16.msra.mxu0 %v268
      %301 = vmatpush.bf16.msra.mxu0 %v266
      %302 = vmatpush.bf16.msra.mxu0 %v264
      %303 = vmatmul.bf16.gmra.mxu0 %v290
      %v304 = vpop.f32.mrf.mxu0
      %v305 = vadd.f32 0.0, %v304
      %v306 = vpop.f32.mrf.mxu0
      %v307 = vadd.f32 0.0, %v306
      %308 = vmatmul.bf16.gmra.mxu0 %v293
      %v309 = vpop.f32.mrf.mxu0
      %v310 = vadd.f32 0.0, %v309
      %v311 = vpop.f32.mrf.mxu0
      %v312 = vadd.f32 0.0, %v311
      %313 = vdwg.mxu0
      %314 = vmatpush.bf16.msra.mxu0 0
      %315 = vmatpush.bf16.msra.mxu0 0
      %316 = vmatpush.bf16.msra.mxu0 %v275
      %317 = vmatpush.bf16.msra.mxu0 %v273
      %318 = vmatpush.bf16.msra.mxu0 %v271
      %319 = vmatpush.bf16.msra.mxu0 %v269
      %320 = vmatpush.bf16.msra.mxu0 %v267
      %321 = vmatpush.bf16.msra.mxu0 %v265
      %322 = vmatmul.bf16.gmra.mxu0 %v290
      %v323 = vpop.f32.mrf.mxu0
      %v324 = vadd.f32 0.0, %v323
      %v325 = vpop.f32.mrf.mxu0
      %v326 = vadd.f32 0.0, %v325
      %327 = vmatmul.bf16.gmra.mxu0 %v293
      %v328 = vpop.f32.mrf.mxu0
      %v329 = vadd.f32 0.0, %v328
      %v330 = vpop.f32.mrf.mxu0
      %v331 = vadd.f32 0.0, %v330
      %332 = vdwg.mxu0
      %v334 = vunpack.c.l.b16 %v175
      %v335 = vpack.c.b16 %v334, %v208
      %v348 = vunpack.c.l.b16 %v176
      %v349 = vunpack.c.h.b16 %v176
      %v350 = vunpack.c.l.b16 %v177
      %v351 = vunpack.c.h.b16 %v177
      %v352 = vunpack.c.l.b16 %v178
      %v353 = vunpack.c.h.b16 %v178
      %v354 = vunpack.c.l.b16 %v179
      %v355 = vunpack.c.h.b16 %v179
      %v356 = vunpack.c.l.b16 %v180
      %v357 = vunpack.c.h.b16 %v180
      %v358 = vunpack.c.l.b16 %v181
      %v359 = vunpack.c.h.b16 %v181
      %v360 = vunpack.c.l.b16 %v182
      %v361 = vunpack.c.h.b16 %v182
      %v362 = vunpack.c.l.b16 %v183
      %v363 = vunpack.c.h.b16 %v183
      %v364 = vunpack.c.l.b16 %v184
      %v365 = vunpack.c.h.b16 %v184
      %v366 = vunpack.c.l.b16 %v185
      %v367 = vunpack.c.h.b16 %v185
      %v368 = vunpack.c.l.b16 %v186
      %v369 = vunpack.c.h.b16 %v186
      %v370 = vunpack.c.l.b16 %v187
      %v371 = vunpack.c.h.b16 %v187
      %v372 = vpack.c.b16 %v350, %v348
      %v373 = vpack.c.b16 %v351, %v349
      %v374 = vpack.c.b16 %v354, %v352
      %v375 = vpack.c.b16 %v355, %v353
      %v376 = vpack.c.b16 %v358, %v356
      %v377 = vpack.c.b16 %v359, %v357
      %v378 = vpack.c.b16 %v362, %v360
      %v379 = vpack.c.b16 %v363, %v361
      %v380 = vpack.c.b16 %v366, %v364
      %v381 = vpack.c.b16 %v367, %v365
      %v382 = vpack.c.b16 %v370, %v368
      %v383 = vpack.c.b16 %v371, %v369
      %v396 = vsel %vm288, %v210, 0
      %v399 = vsel %vm288, %v335, 0
      %401 = vmatpush.bf16.msra.mxu0 0
      %402 = vmatpush.bf16.msra.mxu0 0
      %403 = vmatpush.bf16.msra.mxu0 %v382
      %404 = vmatpush.bf16.msra.mxu0 %v380
      %405 = vmatpush.bf16.msra.mxu0 %v378
      %406 = vmatpush.bf16.msra.mxu0 %v376
      %407 = vmatpush.bf16.msra.mxu0 %v374
      %408 = vmatpush.bf16.msra.mxu0 %v372
      %409 = vmatmul.bf16.gmra.mxu0 %v396
      %v410 = vpop.f32.mrf.mxu0
      %v411 = vadd.f32 %v305, %v410
      %v412 = vpop.f32.mrf.mxu0
      %v413 = vadd.f32 %v307, %v412
      %414 = vmatmul.bf16.gmra.mxu0 %v399
      %v415 = vpop.f32.mrf.mxu0
      %v416 = vadd.f32 %v310, %v415
      %v417 = vpop.f32.mrf.mxu0
      %v418 = vadd.f32 %v312, %v417
      %419 = vdwg.mxu0
      %420 = vmatpush.bf16.msra.mxu0 0
      %421 = vmatpush.bf16.msra.mxu0 0
      %422 = vmatpush.bf16.msra.mxu0 %v383
      %423 = vmatpush.bf16.msra.mxu0 %v381
      %424 = vmatpush.bf16.msra.mxu0 %v379
      %425 = vmatpush.bf16.msra.mxu0 %v377
      %426 = vmatpush.bf16.msra.mxu0 %v375
      %427 = vmatpush.bf16.msra.mxu0 %v373
      %428 = vmatmul.bf16.gmra.mxu0 %v396
      %v429 = vpop.f32.mrf.mxu0
      %v430 = vadd.f32 %v324, %v429
      %v431 = vpop.f32.mrf.mxu0
      %v432 = vadd.f32 %v326, %v431
      %433 = vmatmul.bf16.gmra.mxu0 %v399
      %v434 = vpop.f32.mrf.mxu0
      %v435 = vadd.f32 %v329, %v434
      %v436 = vpop.f32.mrf.mxu0
      %v437 = vadd.f32 %v331, %v436
      %438 = vdwg.mxu0
      %v439 = vld [vmem:[%s165] sm:$0xe]
      %s440 = scalar_lea.vmem %s1, 192
      %v441 = vld [vmem:[%s440] sm:$0xff]
      %v442 = vld [vmem:[%s440 + $0x8] sm:$0xff]
      %v443 = vld [vmem:[%s440 + $0x10] sm:$0xff]
      %v444 = vld [vmem:[%s440 + $0x18] sm:$0xff]
      %v445 = vld [vmem:[%s440 + $0x20] sm:$0xff]
      %v446 = vld [vmem:[%s440 + $0x28] sm:$0xff]
      %v447 = vld [vmem:[%s440 + $0x30] sm:$0xff]
      %v448 = vld [vmem:[%s440 + $0x38] sm:$0xff]
      %v449 = vld [vmem:[%s440 + $0x40] sm:$0xff]
      %v450 = vld [vmem:[%s440 + $0x48] sm:$0xff]
      %v451 = vld [vmem:[%s440 + $0x50] sm:$0xff]
      %v452 = vld [vmem:[%s440 + $0x58] sm:$0xff]
      %v454 = vunpack.c.l.b16 %v439
      %v455 = vpack.c.b16 %v207, %v454
      %vm456 = vcmask 1046528
      %v457 = vrot.slane %v455, 1
      %v458 = vrot.slane %v211, 1
      %v459 = vsel %vm456, %v457, %v458
      %v472 = vunpack.c.l.b16 %v441
      %v473 = vunpack.c.h.b16 %v441
      %v474 = vunpack.c.l.b16 %v442
      %v475 = vunpack.c.h.b16 %v442
      %v476 = vunpack.c.l.b16 %v443
      %v477 = vunpack.c.h.b16 %v443
      %v478 = vunpack.c.l.b16 %v444
      %v479 = vunpack.c.h.b16 %v444
      %v480 = vunpack.c.l.b16 %v445
      %v481 = vunpack.c.h.b16 %v445
      %v482 = vunpack.c.l.b16 %v446
      %v483 = vunpack.c.h.b16 %v446
      %v484 = vunpack.c.l.b16 %v447
      %v485 = vunpack.c.h.b16 %v447
      %v486 = vunpack.c.l.b16 %v448
      %v487 = vunpack.c.h.b16 %v448
      %v488 = vunpack.c.l.b16 %v449
      %v489 = vunpack.c.h.b16 %v449
      %v490 = vunpack.c.l.b16 %v450
      %v491 = vunpack.c.h.b16 %v450
      %v492 = vunpack.c.l.b16 %v451
      %v493 = vunpack.c.h.b16 %v451
      %v494 = vunpack.c.l.b16 %v452
      %v495 = vunpack.c.h.b16 %v452
      %v496 = vpack.c.b16 %v474, %v472
      %v497 = vpack.c.b16 %v475, %v473
      %v498 = vpack.c.b16 %v478, %v476
      %v499 = vpack.c.b16 %v479, %v477
      %v500 = vpack.c.b16 %v482, %v480
      %v501 = vpack.c.b16 %v483, %v481
      %v502 = vpack.c.b16 %v486, %v484
      %v503 = vpack.c.b16 %v487, %v485
      %v504 = vpack.c.b16 %v490, %v488
      %v505 = vpack.c.b16 %v491, %v489
      %v506 = vpack.c.b16 %v494, %v492
      %v507 = vpack.c.b16 %v495, %v493
      %v521 = vsel %vm288, %v459, 0
      %v524 = vsel %vm288, %v458, 0
      %526 = vmatpush.bf16.msra.mxu0 0
      %527 = vmatpush.bf16.msra.mxu0 0
      %528 = vmatpush.bf16.msra.mxu0 %v506
      %529 = vmatpush.bf16.msra.mxu0 %v504
      %530 = vmatpush.bf16.msra.mxu0 %v502
      %531 = vmatpush.bf16.msra.mxu0 %v500
      %532 = vmatpush.bf16.msra.mxu0 %v498
      %533 = vmatpush.bf16.msra.mxu0 %v496
      %534 = vmatmul.bf16.gmra.mxu0 %v521
      %v535 = vpop.f32.mrf.mxu0
      %v536 = vadd.f32 0.0, %v535
      %v537 = vpop.f32.mrf.mxu0
      %v538 = vadd.f32 0.0, %v537
      %539 = vmatmul.bf16.gmra.mxu0 %v524
      %v540 = vpop.f32.mrf.mxu0
      %v541 = vadd.f32 0.0, %v540
      %v542 = vpop.f32.mrf.mxu0
      %v543 = vadd.f32 0.0, %v542
      %544 = vdwg.mxu0
      %545 = vmatpush.bf16.msra.mxu0 0
      %546 = vmatpush.bf16.msra.mxu0 0
      %547 = vmatpush.bf16.msra.mxu0 %v507
      %548 = vmatpush.bf16.msra.mxu0 %v505
      %549 = vmatpush.bf16.msra.mxu0 %v503
      %550 = vmatpush.bf16.msra.mxu0 %v501
      %551 = vmatpush.bf16.msra.mxu0 %v499
      %552 = vmatpush.bf16.msra.mxu0 %v497
      %553 = vmatmul.bf16.gmra.mxu0 %v521
      %v554 = vpop.f32.mrf.mxu0
      %v555 = vadd.f32 0.0, %v554
      %v556 = vpop.f32.mrf.mxu0
      %v557 = vadd.f32 0.0, %v556
      %558 = vmatmul.bf16.gmra.mxu0 %v524
      %v559 = vpop.f32.mrf.mxu0
      %v560 = vadd.f32 0.0, %v559
      %v561 = vpop.f32.mrf.mxu0
      %v562 = vadd.f32 0.0, %v561
      %563 = vdwg.mxu0
      %v564 = vadd.f32 %v411, %v536
      %v565 = vadd.f32 %v430, %v555
      %v566 = vadd.f32 %v413, %v538
      %v567 = vadd.f32 %v432, %v557
      %v568 = vadd.f32 %v416, %v541
      %v569 = vadd.f32 %v435, %v560
      %v570 = vadd.f32 %v418, %v543
      %v571 = vadd.f32 %v437, %v562
      %v572 = vld [vmem:[%s165 + $0xc] sm:$0xf]
      %s573 = scalar_lea.vmem %s1, 288
      %v574 = vld [vmem:[%s573] sm:$0xff]
      %v575 = vld [vmem:[%s573 + $0x8] sm:$0xff]
      %v576 = vld [vmem:[%s573 + $0x10] sm:$0xff]
      %v577 = vld [vmem:[%s573 + $0x18] sm:$0xff]
      %v578 = vld [vmem:[%s573 + $0x20] sm:$0xff]
      %v579 = vld [vmem:[%s573 + $0x28] sm:$0xff]
      %v580 = vld [vmem:[%s573 + $0x30] sm:$0xff]
      %v581 = vld [vmem:[%s573 + $0x38] sm:$0xff]
      %v582 = vld [vmem:[%s573 + $0x40] sm:$0xff]
      %v583 = vld [vmem:[%s573 + $0x48] sm:$0xff]
      %v584 = vld [vmem:[%s573 + $0x50] sm:$0xff]
      %v585 = vld [vmem:[%s573 + $0x58] sm:$0xff]
      %v587 = vunpack.c.l.b16 %v572
      %v588 = vpack.c.b16 %v587, %v208
      %vm589 = vsmask.f32 6400
      %v591 = vshrl.u32 %v455, 16
      %v593 = vrot.slane %v591, 1
      %v594 = vshll.u32 %v455, 16
      %v596 = vrot.slane %v594, 2
      %v597 = vor.u32 %v593, %v596
      %v599 = vshrl.u32 %v588, 16
      %v601 = vrot.slane %v599, 1
      %v602 = vshll.u32 %v588, 16
      %v604 = vrot.slane %v602, 2
      %v605 = vor.u32 %v601, %v604
      %v606 = vsel %vm589, %v597, %v605
      %v619 = vunpack.c.l.b16 %v574
      %v620 = vunpack.c.h.b16 %v574
      %v621 = vunpack.c.l.b16 %v575
      %v622 = vunpack.c.h.b16 %v575
      %v623 = vunpack.c.l.b16 %v576
      %v624 = vunpack.c.h.b16 %v576
      %v625 = vunpack.c.l.b16 %v577
      %v626 = vunpack.c.h.b16 %v577
      %v627 = vunpack.c.l.b16 %v578
      %v628 = vunpack.c.h.b16 %v578
      %v629 = vunpack.c.l.b16 %v579
      %v630 = vunpack.c.h.b16 %v579
      %v631 = vunpack.c.l.b16 %v580
      %v632 = vunpack.c.h.b16 %v580
      %v633 = vunpack.c.l.b16 %v581
      %v634 = vunpack.c.h.b16 %v581
      %v635 = vunpack.c.l.b16 %v582
      %v636 = vunpack.c.h.b16 %v582
      %v637 = vunpack.c.l.b16 %v583
      %v638 = vunpack.c.h.b16 %v583
      %v639 = vunpack.c.l.b16 %v584
      %v640 = vunpack.c.h.b16 %v584
      %v641 = vunpack.c.l.b16 %v585
      %v642 = vunpack.c.h.b16 %v585
      %v643 = vpack.c.b16 %v621, %v619
      %v644 = vpack.c.b16 %v622, %v620
      %v645 = vpack.c.b16 %v625, %v623
      %v646 = vpack.c.b16 %v626, %v624
      %v647 = vpack.c.b16 %v629, %v627
      %v648 = vpack.c.b16 %v630, %v628
      %v649 = vpack.c.b16 %v633, %v631
      %v650 = vpack.c.b16 %v634, %v632
      %v651 = vpack.c.b16 %v637, %v635
      %v652 = vpack.c.b16 %v638, %v636
      %v653 = vpack.c.b16 %v641, %v639
      %v654 = vpack.c.b16 %v642, %v640
      %v668 = vsel %vm288, %v606, 0
      %v671 = vsel %vm288, %v605, 0
      %673 = vmatpush.bf16.msra.mxu0 0
      %674 = vmatpush.bf16.msra.mxu0 0
      %675 = vmatpush.bf16.msra.mxu0 %v653
      %676 = vmatpush.bf16.msra.mxu0 %v651
      %677 = vmatpush.bf16.msra.mxu0 %v649
      %678 = vmatpush.bf16.msra.mxu0 %v647
      %679 = vmatpush.bf16.msra.mxu0 %v645
      %680 = vmatpush.bf16.msra.mxu0 %v643
      %681 = vmatmul.bf16.gmra.mxu0 %v668
      %v682 = vpop.f32.mrf.mxu0
      %v683 = vadd.f32 0.0, %v682
      %v684 = vpop.f32.mrf.mxu0
      %v685 = vadd.f32 0.0, %v684
      %686 = vmatmul.bf16.gmra.mxu0 %v671
      %v687 = vpop.f32.mrf.mxu0
      %v688 = vadd.f32 0.0, %v687
      %v689 = vpop.f32.mrf.mxu0
      %v690 = vadd.f32 0.0, %v689
      %691 = vdwg.mxu0
      %692 = vmatpush.bf16.msra.mxu0 0
      %693 = vmatpush.bf16.msra.mxu0 0
      %694 = vmatpush.bf16.msra.mxu0 %v654
      %695 = vmatpush.bf16.msra.mxu0 %v652
      %696 = vmatpush.bf16.msra.mxu0 %v650
      %697 = vmatpush.bf16.msra.mxu0 %v648
      %698 = vmatpush.bf16.msra.mxu0 %v646
      %699 = vmatpush.bf16.msra.mxu0 %v644
      %700 = vmatmul.bf16.gmra.mxu0 %v668
      %v701 = vpop.f32.mrf.mxu0
      %v702 = vadd.f32 0.0, %v701
      %v703 = vpop.f32.mrf.mxu0
      %v704 = vadd.f32 0.0, %v703
      %705 = vmatmul.bf16.gmra.mxu0 %v671
      %v706 = vpop.f32.mrf.mxu0
      %v707 = vadd.f32 0.0, %v706
      %v708 = vpop.f32.mrf.mxu0
      %v709 = vadd.f32 0.0, %v708
      %710 = vdwg.mxu0
      %v711 = vadd.f32 %v564, %v683
      %v712 = vadd.f32 %v565, %v702
      %v713 = vadd.f32 %v566, %v685
      %v714 = vadd.f32 %v567, %v704
      %v715 = vadd.f32 %v568, %v688
      %v716 = vadd.f32 %v569, %v707
      %v717 = vadd.f32 %v570, %v690
      %v718 = vadd.f32 %v571, %v709
      %v719 = vld [vmem:[%s165] sm:$0xc]
      %s720 = scalar_lea.vmem %s1, 384
      %v721 = vld [vmem:[%s720] sm:$0xff]
      %v722 = vld [vmem:[%s720 + $0x8] sm:$0xff]
      %v723 = vld [vmem:[%s720 + $0x10] sm:$0xff]
      %v724 = vld [vmem:[%s720 + $0x18] sm:$0xff]
      %v725 = vld [vmem:[%s720 + $0x20] sm:$0xff]
      %v726 = vld [vmem:[%s720 + $0x28] sm:$0xff]
      %v727 = vld [vmem:[%s720 + $0x30] sm:$0xff]
      %v728 = vld [vmem:[%s720 + $0x38] sm:$0xff]
      %v729 = vld [vmem:[%s720 + $0x40] sm:$0xff]
      %v730 = vld [vmem:[%s720 + $0x48] sm:$0xff]
      %v731 = vld [vmem:[%s720 + $0x50] sm:$0xff]
      %v732 = vld [vmem:[%s720 + $0x58] sm:$0xff]
      %v734 = vunpack.c.l.b16 %v719
      %v735 = vpack.c.b16 %v207, %v734
      %vm736 = vcmask 1045504
      %v737 = vrot.slane %v735, 2
      %v738 = vrot.slane %v588, 2
      %v739 = vsel %vm736, %v737, %v738
      %v752 = vunpack.c.l.b16 %v721
      %v753 = vunpack.c.h.b16 %v721
      %v754 = vunpack.c.l.b16 %v722
      %v755 = vunpack.c.h.b16 %v722
      %v756 = vunpack.c.l.b16 %v723
      %v757 = vunpack.c.h.b16 %v723
      %v758 = vunpack.c.l.b16 %v724
      %v759 = vunpack.c.h.b16 %v724
      %v760 = vunpack.c.l.b16 %v725
      %v761 = vunpack.c.h.b16 %v725
      %v762 = vunpack.c.l.b16 %v726
      %v763 = vunpack.c.h.b16 %v726
      %v764 = vunpack.c.l.b16 %v727
      %v765 = vunpack.c.h.b16 %v727
      %v766 = vunpack.c.l.b16 %v728
      %v767 = vunpack.c.h.b16 %v728
      %v768 = vunpack.c.l.b16 %v729
      %v769 = vunpack.c.h.b16 %v729
      %v770 = vunpack.c.l.b16 %v730
      %v771 = vunpack.c.h.b16 %v730
      %v772 = vunpack.c.l.b16 %v731
      %v773 = vunpack.c.h.b16 %v731
      %v774 = vunpack.c.l.b16 %v732
      %v775 = vunpack.c.h.b16 %v732
      %v776 = vpack.c.b16 %v754, %v752
      %v777 = vpack.c.b16 %v755, %v753
      %v778 = vpack.c.b16 %v758, %v756
      %v779 = vpack.c.b16 %v759, %v757
      %v780 = vpack.c.b16 %v762, %v760
      %v781 = vpack.c.b16 %v763, %v761
      %v782 = vpack.c.b16 %v766, %v764
      %v783 = vpack.c.b16 %v767, %v765
      %v784 = vpack.c.b16 %v770, %v768
      %v785 = vpack.c.b16 %v771, %v769
      %v786 = vpack.c.b16 %v774, %v772
      %v787 = vpack.c.b16 %v775, %v773
      %v801 = vsel %vm288, %v739, 0
      %v804 = vsel %vm288, %v738, 0
      %806 = vmatpush.bf16.msra.mxu0 0
      %807 = vmatpush.bf16.msra.mxu0 0
      %808 = vmatpush.bf16.msra.mxu0 %v786
      %809 = vmatpush.bf16.msra.mxu0 %v784
      %810 = vmatpush.bf16.msra.mxu0 %v782
      %811 = vmatpush.bf16.msra.mxu0 %v780
      %812 = vmatpush.bf16.msra.mxu0 %v778
      %813 = vmatpush.bf16.msra.mxu0 %v776
      %814 = vmatmul.bf16.gmra.mxu0 %v801
      %v815 = vpop.f32.mrf.mxu0
      %v816 = vadd.f32 0.0, %v815
      %v817 = vpop.f32.mrf.mxu0
      %v818 = vadd.f32 0.0, %v817
      %819 = vmatmul.bf16.gmra.mxu0 %v804
      %v820 = vpop.f32.mrf.mxu0
      %v821 = vadd.f32 0.0, %v820
      %v822 = vpop.f32.mrf.mxu0
      %v823 = vadd.f32 0.0, %v822
      %824 = vdwg.mxu0
      %825 = vmatpush.bf16.msra.mxu0 0
      %826 = vmatpush.bf16.msra.mxu0 0
      %827 = vmatpush.bf16.msra.mxu0 %v787
      %828 = vmatpush.bf16.msra.mxu0 %v785
      %829 = vmatpush.bf16.msra.mxu0 %v783
      %830 = vmatpush.bf16.msra.mxu0 %v781
      %831 = vmatpush.bf16.msra.mxu0 %v779
      %832 = vmatpush.bf16.msra.mxu0 %v777
      %833 = vmatmul.bf16.gmra.mxu0 %v801
      %v834 = vpop.f32.mrf.mxu0
      %v835 = vadd.f32 0.0, %v834
      %v836 = vpop.f32.mrf.mxu0
      %v837 = vadd.f32 0.0, %v836
      %838 = vmatmul.bf16.gmra.mxu0 %v804
      %v839 = vpop.f32.mrf.mxu0
      %v840 = vadd.f32 0.0, %v839
      %v841 = vpop.f32.mrf.mxu0
      %v842 = vadd.f32 0.0, %v841
      %843 = vdwg.mxu0
      %v844 = vadd.f32 %v711, %v816
      %v845 = vadd.f32 %v712, %v835
      %v846 = vadd.f32 %v713, %v818
      %v847 = vadd.f32 %v714, %v837
      %v848 = vadd.f32 %v715, %v821
      %v849 = vadd.f32 %v716, %v840
      %v850 = vadd.f32 %v717, %v823
      %v851 = vadd.f32 %v718, %v842
      %v852 = vld [vmem:[%s2] sm:$0x3]
      %v854 = vperm.slane %v852, 0
      %v855 = vperm.slane %v852, 1
      %v858 = vadd.f32 %v844, %v854
      %v859 = vadd.f32 %v845, %v855
      %v860 = vadd.f32 %v846, %v854
      %v861 = vadd.f32 %v847, %v855
      %v862 = vadd.f32 %v848, %v854
      %v863 = vadd.f32 %v849, %v855
      %v864 = vadd.f32 %v850, %v854
      %v865 = vadd.f32 %v851, %v855
      %v866 = vmax.f32 %v858, 0.0
      %v867 = vmax.f32 %v859, 0.0
      %v868 = vmax.f32 %v860, 0.0
      %v869 = vmax.f32 %v861, 0.0
      %v870 = vmax.f32 %v862, 0.0
      %v871 = vmax.f32 %v863, 0.0
      %v872 = vmax.f32 %v864, 0.0
      %v873 = vmax.f32 %v865, 0.0
      %v874 = vpack.c.bf16 %v867, %v866
      %v875 = vpack.c.bf16 %v869, %v868
      %v876 = vpack.c.bf16 %v871, %v870
      %v877 = vpack.c.bf16 %v873, %v872
      %vm878 = vcmask 1043456
      %vm879 = vcmask 326660
      %vm880 = vmor %vm879, %vm878
      %881 = vst.msk [vmem:[%s170] sm:$0xff] %vm880, %v874
      %882 = vst.msk [vmem:[%s170 + $0x8] sm:$0xff] %vm880, %v875
      %883 = vst.msk [vmem:[%s170 + $0x10] sm:$0xff] %vm880, %v876
      %vm884 = vcmask 1041408
      %vm885 = vcmask 324612
      %vm886 = vmor %vm885, %vm884
      %887 = vst.msk [vmem:[%s170 + $0x18] sm:$0x33] %vm886, %v877
      %p888 = scmp.lt.s32.totalorder %s14, 1
      %s889 = scalar_select %p888, %s14, 1
      %s890 = smul.addr %s889, 8
      %s891 = smul.addr %s890, 4
      %s892 = scalar_lea.vmem %s3, %s891
      // Predicated region
      $region33: #{net_forward.3} parent=31 // pred_check
        %p893 = pneg %p100
      $region34: #{net_forward.3} parent=31 // pred_check_branch
        %895 = sbr.rel (%p893) target = $region36
      $region35: #{net_forward.3} parent=31 // pred_region
        _
      $region36: #{net_forward.3} parent=31 // pred_fallthru
        _
    $region32: #{net_forward.3} parent=5 // pred_fallthru
      _
    %p896 = scmp.le.s32.totalorder 2, %s9
    // Predicated region
    $region37: #{net_forward.3} parent=5 // pred_check
      %p897 = pneg %p896
    $region38: #{net_forward.3} parent=5 // pred_check_branch
      %899 = sbr.rel (%p897) target = $region40
    $region39: #{net_forward.3} parent=5 // pred_region
      %s900 = ssub.s32 %s9, 2
      // Predicated region
      $region41: #{net_forward.3} parent=39 // pred_check
        %p901 = pneg %p106
      $region42: #{net_forward.3} parent=39 // pred_check_branch
        %903 = sbr.rel (%p901) target = $region44
      $region43: #{net_forward.3} parent=39 // pred_region
        %p904 = scmp.lt.s32.totalorder %s15, 1
        %s905 = scalar_select %p904, %s15, 1
        %s906 = smul.addr %s905, 8
        %s907 = smul.addr %s906, 4
        %s908 = scalar_lea.vmem %s3, %s907
      $region44: #{net_forward.3} parent=39 // pred_fallthru
        _
    $region40: #{net_forward.3} parent=5 // pred_fallthru
      _
  $region6: #{net_forward.3} parent=0 // loop_footer
    %s13 = sadd.s32 1, %s9
  $region7: #{net_forward.3} parent=0 // loop_footer_branch
    %8 = sbr.rel target = $region3
  $region8: #{net_forward.3} parent=0 // loop_exit
    _

// kernel: net_forward.4
$region0: #{net_forward.4}
  #allocation0 [shape = 'u32[]', space=smem, size = 0x4, offset = 0x4, fixed_abs, tag = 'smem constant byte address 0x4 - core index']
  #allocation1 [shape = 'u32[72,128]{1,0:T(1,128)}', space=vmem, size = 0x9000, scoped, tag = 'internal scratch']
  %s0 = inlined_call_operand.vmem [shape: bf16[2,14,84], index: 0, kind: input, shape index: {}]
  %s1 = inlined_call_operand.vmem [shape: bf16[5,84,160], index: 1, kind: input, shape index: {}]
  %s2 = inlined_call_operand.vmem [shape: f32[1,160], index: 2, kind: input, shape index: {}]
  %s3 = inlined_call_operand.vmem [shape: bf16[2,10,160], index: 3, kind: output, shape index: {}]
  %s4 = sld [smem:[#allocation0]]
  $region45: #{net_forward.4} parent=0
    _
  %s6 = ssub.s32 1, %s4
  %s7 = scalar_select 0, %s6, %s4
  loop: start=0, step=1, limit=4
  $region2: #{net_forward.4} parent=0 // loop_pre_header
    _
  $region3: #{net_forward.4} parent=0 // loop_header
    %s9 = sphi 0, %s13
    %p10 = scmp.ge.s32.totalorder %s9, 4
    %s19 = sphi 0, %s21
    %s22 = sphi 0, %s19
    %s23 = sphi 0, %s22
    %s39 = sphi 0, %s23
    %s43 = sphi 0, %s43
    %s45 = sphi 0, %s43
    %s46 = sphi 0, %s45
    %s60 = sphi 0, %s46
    %s64 = sphi 0, %s64
    %s66 = sphi 0, %s64
    %s67 = sphi 0, %s66
    %s81 = sphi 0, %s67
    %s87 = sphi 0, %s89
    %s90 = sphi 0, %s87
    %s91 = sphi 0, %s90
    %s107 = sphi 0, %s91
  $region4: #{net_forward.4} parent=0 // loop_header_branch
    %12 = sbr.rel (%p10) target = $region8
  $region5: #{net_forward.4} parent=0 // loop_body
    %s14 = ssub.s32 %s9, 1
    %s15 = ssub.s32 %s9, 2
    %s16 = sadd.s32 %s9, 1
    %s17 = ssub.s32 %s9, %s16
    %p18 = scmp.eq.s32.totalorder %s17, 0
    %s20 = sadd.s32 %s19, 1
    %s21 = scalar_select %p18, %s19, %s20
    %p24 = pneg %p18
    %p25 = scmp.eq.s32.totalorder %s9, 1
    %p26 = por %p24, %p25
    %p27 = scmp.ne.s32.totalorder %s19, %s22
    %p28 = scmp.eq.s32.totalorder %s9, 0
    %p29 = por %p27, %p28
    %p30 = scmp.ne.s32.totalorder %s19, %s22
    %p31 = scmp.eq.s32.totalorder %s14, 1
    %p32 = por %p30, %p31
    %p33 = scmp.ne.s32.totalorder %s22, %s23
    %p34 = scmp.eq.s32.totalorder %s14, 0
    %p35 = por %p33, %p34
    %p36 = scmp.ne.s32.totalorder %s22, %s23
    %p37 = scmp.eq.s32.totalorder %s15, 1
    %p38 = por %p36, %p37
    %p40 = scmp.ne.s32.totalorder %s23, %s39
    %p41 = scmp.eq.s32.totalorder %s15, 0
    %p42 = por %p40, %p41
    %s44 = sadd.s32 %s43, 1
    %p47 = scmp.eq.s32.totalorder %s9, 1
    %p48 = scmp.ne.s32.totalorder %s43, %s45
    %p49 = scmp.eq.s32.totalorder %s9, 0
    %p50 = por %p48, %p49
    %p51 = scmp.ne.s32.totalorder %s43, %s45
    %p52 = scmp.eq.s32.totalorder %s14, 1
    %p53 = por %p51, %p52
    %p54 = scmp.ne.s32.totalorder %s45, %s46
    %p55 = scmp.eq.s32.totalorder %s14, 0
    %p56 = por %p54, %p55
    %p57 = scmp.ne.s32.totalorder %s45, %s46
    %p58 = scmp.eq.s32.totalorder %s15, 1
    %p59 = por %p57, %p58
    %p61 = scmp.ne.s32.totalorder %s46, %s60
    %p62 = scmp.eq.s32.totalorder %s15, 0
    %p63 = por %p61, %p62
    %s65 = sadd.s32 %s64, 1
    %p68 = scmp.eq.s32.totalorder %s9, 1
    %p69 = scmp.ne.s32.totalorder %s64, %s66
    %p70 = scmp.eq.s32.totalorder %s9, 0
    %p71 = por %p69, %p70
    %p72 = scmp.ne.s32.totalorder %s64, %s66
    %p73 = scmp.eq.s32.totalorder %s14, 1
    %p74 = por %p72, %p73
    %p75 = scmp.ne.s32.totalorder %s66, %s67
    %p76 = scmp.eq.s32.totalorder %s14, 0
    %p77 = por %p75, %p76
    %p78 = scmp.ne.s32.totalorder %s66, %s67
    %p79 = scmp.eq.s32.totalorder %s15, 1
    %p80 = por %p78, %p79
    %p82 = scmp.ne.s32.totalorder %s67, %s81
    %p83 = scmp.eq.s32.totalorder %s15, 0
    %p84 = por %p82, %p83
    %s85 = ssub.s32 %s9, %s16
    %p86 = scmp.eq.s32.totalorder %s85, 0
    %s88 = sadd.s32 %s87, 1
    %s89 = scalar_select %p86, %s87, %s88
    %p92 = pneg %p86
    %p93 = scmp.eq.s32.totalorder %s9, 1
    %p94 = por %p92, %p93
    %p95 = scmp.ne.s32.totalorder %s87, %s90
    %p96 = scmp.eq.s32.totalorder %s9, 0
    %p97 = por %p95, %p96
    %p98 = scmp.ne.s32.totalorder %s87, %s90
    %p99 = scmp.eq.s32.totalorder %s14, 1
    %p100 = por %p98, %p99
    %p101 = scmp.ne.s32.totalorder %s90, %s91
    %p102 = scmp.eq.s32.totalorder %s14, 0
    %p103 = por %p101, %p102
    %p104 = scmp.ne.s32.totalorder %s90, %s91
    %p105 = scmp.eq.s32.totalorder %s15, 1
    %p106 = por %p104, %p105
    %p108 = scmp.ne.s32.totalorder %s91, %s107
    %p109 = scmp.eq.s32.totalorder %s15, 0
    %p110 = por %p108, %p109
    %p111 = scmp.le.s32.totalorder 1, %s9
    %p112 = scmp.lt.s32.totalorder %s9, 3
    %p113 = pnand %p111, %p112
    %p114 = pneg %p113
    // Predicated region
    $region9: #{net_forward.4} parent=5 // pred_check
      _
    $region10: #{net_forward.4} parent=5 // pred_check_branch
      %116 = sbr.rel (%p113) target = $region12
    $region11: #{net_forward.4} parent=5 // pred_region
      %s117 = ssub.s32 %s9, 1
      // Predicated region
      $region13: #{net_forward.4} parent=11 // pred_check
        %p118 = pneg %p56
      $region14: #{net_forward.4} parent=11 // pred_check_branch
        %120 = sbr.rel (%p118) target = $region16
      $region15: #{net_forward.4} parent=11 // pred_region
        _
      $region16: #{net_forward.4} parent=11 // pred_fallthru
        _
      // Predicated region
      $region17: #{net_forward.4} parent=11 // pred_check
        %p121 = pneg %p77
      $region18: #{net_forward.4} parent=11 // pred_check_branch
        %123 = sbr.rel (%p121) target = $region20
      $region19: #{net_forward.4} parent=11 // pred_region
        _
      $region20: #{net_forward.4} parent=11 // pred_fallthru
        _
    $region12: #{net_forward.4} parent=5 // pred_fallthru
      _
    %p124 = scmp.lt.s32.totalorder %s9, 2
    // Predicated region
    $region21: #{net_forward.4} parent=5 // pred_check
      %p125 = pneg %p124
    $region22: #{net_forward.4} parent=5 // pred_check_branch
      %127 = sbr.rel (%p125) target = $region24
    $region23: #{net_forward.4} parent=5 // pred_region
      // Predicated region
      $region25: #{net_forward.4} parent=23 // pred_check
        %p128 = pneg %p29
      $region26: #{net_forward.4} parent=23 // pred_check_branch
        %130 = sbr.rel (%p128) target = $region28
      $region27: #{net_forward.4} parent=23 // pred_region
        %p131 = scmp.lt.s32.totalorder %s9, 1
        %s132 = scalar_select %p131, %s9, 1
        %s133 = smul.addr %s132, 2
        %s134 = smul.addr %s133, 4
        %s135 = scalar_lea.vmem %s0, %s134
      $region28: #{net_forward.4} parent=23 // pred_fallthru
        _
    $region24: #{net_forward.4} parent=5 // pred_fallthru
      _
    %p136 = scmp.le.s32.totalorder 1, %s9
    %p137 = scmp.lt.s32.totalorder %s9, 3
    %p138 = pnand %p136, %p137
    %p139 = pneg %p138
    // Predicated region
    $region29: #{net_forward.4} parent=5 // pred_check
      _
    $region30: #{net_forward.4} parent=5 // pred_check_branch
      %141 = sbr.rel (%p138) target = $region32
    $region31: #{net_forward.4} parent=5 // pred_region
      %s142 = ssub.s32 %s9, 1
      %p143 = scmp.lt.s32.totalorder %s14, 1
      %s144 = scalar_select %p143, %s14, 1
      %s145 = smul.addr %s144, 2
      %s146 = smul.addr %s145, 4
      %s147 = scalar_lea.vmem %s0, %s146
      %p148 = pneg %p35
      %p149 = pneg %p32
      %p150 = pneg %p56
      %p151 = pneg %p53
      %p152 = pneg %p77
      %p153 = pneg %p74
      %p154 = pneg %p103
      %p155 = pneg %p100
      %p156 = scmp.lt.s32.totalorder %s14, 1
      %s157 = scalar_select %p156, %s14, 1
      %s158 = smul.addr %s157, 4
      %s159 = smul.addr %s158, 4
      %s160 = scalar_lea.vmem %s3, %s159
      %p161 = scmp.lt.s32.totalorder %s14, 1
      %s162 = scalar_select %p161, %s14, 1
      %s163 = smul.addr %s162, 2
      %s164 = smul.addr %s163, 4
      %s165 = scalar_lea.vmem %s0, %s164
      %p166 = scmp.lt.s32.totalorder %s14, 1
      %s167 = scalar_select %p166, %s14, 1
      %s168 = smul.addr %s167, 4
      %s169 = smul.addr %s168, 4
      %s170 = scalar_lea.vmem %s3, %s169
      %v172 = vld [vmem:[%s165] sm:$0xf]
      %v173 = vld [vmem:[%s165 + $0x4] sm:$0x1]
      %v174 = vld [vmem:[%s1] sm:$0xff]
      %v175 = vld [vmem:[%s1 + $0x8] sm:$0xff]
      %v176 = vld [vmem:[%s1 + $0x10] sm:$0xff]
      %v177 = vld [vmem:[%s1 + $0x18] sm:$0xff]
      %v178 = vld [vmem:[%s1 + $0x20] sm:$0xff]
      %v179 = vld [vmem:[%s1 + $0x28] sm:$0xff]
      %v180 = vld [vmem:[%s1 + $0x30] sm:$0xff]
      %v181 = vld [vmem:[%s1 + $0x38] sm:$0xff]
      %v182 = vld [vmem:[%s1 + $0x40] sm:$0xff]
      %v183 = vld [vmem:[%s1 + $0x48] sm:$0xff]
      %v184 = vld [vmem:[%s1 + $0x50] sm:$0x33]
      %v185 = vld [vmem:[%s165 + $0x4] sm:$0x3]
      %s186 = scalar_lea.vmem %s1, 88
      %v187 = vld [vmem:[%s186] sm:$0xff]
      %v188 = vld [vmem:[%s186 + $0x8] sm:$0xff]
      %v189 = vld [vmem:[%s186 + $0x10] sm:$0xff]
      %v190 = vld [vmem:[%s186 + $0x18] sm:$0xff]
      %v191 = vld [vmem:[%s186 + $0x20] sm:$0xff]
      %v192 = vld [vmem:[%s186 + $0x28] sm:$0xff]
      %v193 = vld [vmem:[%s186 + $0x30] sm:$0xff]
      %v194 = vld [vmem:[%s186 + $0x38] sm:$0xff]
      %v195 = vld [vmem:[%s186 + $0x40] sm:$0xff]
      %v196 = vld [vmem:[%s186 + $0x48] sm:$0xff]
      %v197 = vld [vmem:[%s186 + $0x50] sm:$0x33]
      %v200 = vunpack.c.l.b16 %v172
      %v201 = vunpack.c.l.b16 %v185
      %v202 = vpack.c.b16 %v201, %v200
      %v204 = vshrl.u32 %v202, 16
      %v206 = vshll.u32 %v202, 16
      %v208 = vrot.slane %v206, 1
      %v209 = vor.u32 %v204, %v208
      %v221 = vunpack.c.l.b16 %v187
      %v222 = vunpack.c.h.b16 %v187
      %v223 = vunpack.c.l.b16 %v188
      %v224 = vunpack.c.h.b16 %v188
      %v225 = vunpack.c.l.b16 %v189
      %v226 = vunpack.c.h.b16 %v189
      %v227 = vunpack.c.l.b16 %v190
      %v228 = vunpack.c.h.b16 %v190
      %v229 = vunpack.c.l.b16 %v191
      %v230 = vunpack.c.h.b16 %v191
      %v231 = vunpack.c.l.b16 %v192
      %v232 = vunpack.c.h.b16 %v192
      %v233 = vunpack.c.l.b16 %v193
      %v234 = vunpack.c.h.b16 %v193
      %v235 = vunpack.c.l.b16 %v194
      %v236 = vunpack.c.h.b16 %v194
      %v237 = vunpack.c.l.b16 %v195
      %v238 = vunpack.c.h.b16 %v195
      %v239 = vunpack.c.l.b16 %v196
      %v240 = vunpack.c.h.b16 %v196
      %v241 = vunpack.c.l.b16 %v197
      %v242 = vunpack.c.h.b16 %v197
      %v243 = vpack.c.b16 %v223, %v221
      %v244 = vpack.c.b16 %v224, %v222
      %v245 = vpack.c.b16 %v227, %v225
      %v246 = vpack.c.b16 %v228, %v226
      %v247 = vpack.c.b16 %v231, %v229
      %v248 = vpack.c.b16 %v232, %v230
      %v249 = vpack.c.b16 %v235, %v233
      %v250 = vpack.c.b16 %v236, %v234
      %v251 = vpack.c.b16 %v239, %v237
      %v252 = vpack.c.b16 %v240, %v238
      %v253 = vpack.c.b16 %v241, %v241
      %v254 = vpack.c.b16 %v242, %v242
      %vm265 = vcmask 687104
      %v267 = vsel %vm265, %v209, 0
      %vm269 = vcmask 1041408
      %v271 = vsel %vm269, %v253, 0
      %v274 = vsel %vm269, %v254, 0
      %276 = vmatpush.bf16.msra.mxu0 0
      %277 = vmatpush.bf16.msra.mxu0 0
      %278 = vmatpush.bf16.msra.mxu0 %v271
      %279 = vmatpush.bf16.msra.mxu0 %v251
      %280 = vmatpush.bf16.msra.mxu0 %v249
      %281 = vmatpush.bf16.msra.mxu0 %v247
      %282 = vmatpush.bf16.msra.mxu0 %v245
      %283 = vmatpush.bf16.msra.mxu0 %v243
      %284 = vmatmul.bf16.gmra.mxu0 %v267
      %v285 = vpop.f32.mrf.mxu0
      %v286 = vadd.f32 0.0, %v285
      %v287 = vpop.f32.mrf.mxu0
      %v288 = vadd.f32 0.0, %v287
      %289 = vdwg.mxu0
      %290 = vmatpush.bf16.msra.mxu0 0
      %291 = vmatpush.bf16.msra.mxu0 0
      %292 = vmatpush.bf16.msra.mxu0 %v274
      %293 = vmatpush.bf16.msra.mxu0 %v252
      %294 = vmatpush.bf16.msra.mxu0 %v250
      %295 = vmatpush.bf16.msra.mxu0 %v248
      %296 = vmatpush.bf16.msra.mxu0 %v246
      %297 = vmatpush.bf16.msra.mxu0 %v244
      %298 = vmatmul.bf16.gmra.mxu0 %v267
      %v299 = vpop.f32.mrf.mxu0
      %v300 = vadd.f32 0.0, %v299
      %v301 = vpop.f32.mrf.mxu0
      %v302 = vadd.f32 0.0, %v301
      %303 = vdwg.mxu0
      %v305 = vunpack.c.l.b16 %v173
      %v306 = vpack.c.b16 %v305, %v200
      %v318 = vunpack.c.l.b16 %v174
      %v319 = vunpack.c.h.b16 %v174
      %v320 = vunpack.c.l.b16 %v175
      %v321 = vunpack.c.h.b16 %v175
      %v322 = vunpack.c.l.b16 %v176
      %v323 = vunpack.c.h.b16 %v176
      %v324 = vunpack.c.l.b16 %v177
      %v325 = vunpack.c.h.b16 %v177
      %v326 = vunpack.c.l.b16 %v178
      %v327 = vunpack.c.h.b16 %v178
      %v328 = vunpack.c.l.b16 %v179
      %v329 = vunpack.c.h.b16 %v179
      %v330 = vunpack.c.l.b16 %v180
      %v331 = vunpack.c.h.b16 %v180
      %v332 = vunpack.c.l.b16 %v181
      %v333 = vunpack.c.h.b16 %v181
      %v334 = vunpack.c.l.b16 %v182
      %v335 = vunpack.c.h.b16 %v182
      %v336 = vunpack.c.l.b16 %v183
      %v337 = vunpack.c.h.b16 %v183
      %v338 = vunpack.c.l.b16 %v184
      %v339 = vunpack.c.h.b16 %v184
      %v340 = vpack.c.b16 %v320, %v318
      %v341 = vpack.c.b16 %v321, %v319
      %v342 = vpack.c.b16 %v324, %v322
      %v343 = vpack.c.b16 %v325, %v323
      %v344 = vpack.c.b16 %v328, %v326
      %v345 = vpack.c.b16 %v329, %v327
      %v346 = vpack.c.b16 %v332, %v330
      %v347 = vpack.c.b16 %v333, %v331
      %v348 = vpack.c.b16 %v336, %v334
      %v349 = vpack.c.b16 %v337, %v335
      %v350 = vpack.c.b16 %v338, %v338
      %v351 = vpack.c.b16 %v339, %v339
      %v363 = vsel %vm265, %v306, 0
      %v366 = vsel %vm269, %v350, 0
      %v369 = vsel %vm269, %v351, 0
      %371 = vmatpush.bf16.msra.mxu0 0
      %372 = vmatpush.bf16.msra.mxu0 0
      %373 = vmatpush.bf16.msra.mxu0 %v366
      %374 = vmatpush.bf16.msra.mxu0 %v348
      %375 = vmatpush.bf16.msra.mxu0 %v346
      %376 = vmatpush.bf16.msra.mxu0 %v344
      %377 = vmatpush.bf16.msra.mxu0 %v342
      %378 = vmatpush.bf16.msra.mxu0 %v340
      %379 = vmatmul.bf16.gmra.mxu0 %v363
      %v380 = vpop.f32.mrf.mxu0
      %v381 = vadd.f32 %v286, %v380
      %v382 = vpop.f32.mrf.mxu0
      %v383 = vadd.f32 %v288, %v382
      %384 = vdwg.mxu0
      %385 = vmatpush.bf16.msra.mxu0 0
      %386 = vmatpush.bf16.msra.mxu0 0
      %387 = vmatpush.bf16.msra.mxu0 %v369
      %388 = vmatpush.bf16.msra.mxu0 %v349
      %389 = vmatpush.bf16.msra.mxu0 %v347
      %390 = vmatpush.bf16.msra.mxu0 %v345
      %391 = vmatpush.bf16.msra.mxu0 %v343
      %392 = vmatpush.bf16.msra.mxu0 %v341
      %393 = vmatmul.bf16.gmra.mxu0 %v363
      %v394 = vpop.f32.mrf.mxu0
      %v395 = vadd.f32 %v300, %v394
      %v396 = vpop.f32.mrf.mxu0
      %v397 = vadd.f32 %v302, %v396
      %398 = vdwg.mxu0
      %v399 = vld [vmem:[%s165] sm:$0xe]
      %s400 = scalar_lea.vmem %s1, 176
      %v401 = vld [vmem:[%s400] sm:$0xff]
      %v402 = vld [vmem:[%s400 + $0x8] sm:$0xff]
      %v403 = vld [vmem:[%s400 + $0x10] sm:$0xff]
      %v404 = vld [vmem:[%s400 + $0x18] sm:$0xff]
      %v405 = vld [vmem:[%s400 + $0x20] sm:$0xff]
      %v406 = vld [vmem:[%s400 + $0x28] sm:$0xff]
      %v407 = vld [vmem:[%s400 + $0x30] sm:$0xff]
      %v408 = vld [vmem:[%s400 + $0x38] sm:$0xff]
      %v409 = vld [vmem:[%s400 + $0x40] sm:$0xff]
      %v410 = vld [vmem:[%s400 + $0x48] sm:$0xff]
      %v411 = vld [vmem:[%s400 + $0x50] sm:$0x33]
      %v413 = vunpack.c.l.b16 %v399
      %v414 = vpack.c.b16 %v201, %v413
      %v415 = vrot.slane %v414, 1
      %v427 = vunpack.c.l.b16 %v401
      %v428 = vunpack.c.h.b16 %v401
      %v429 = vunpack.c.l.b16 %v402
      %v430 = vunpack.c.h.b16 %v402
      %v431 = vunpack.c.l.b16 %v403
      %v432 = vunpack.c.h.b16 %v403
      %v433 = vunpack.c.l.b16 %v404
      %v434 = vunpack.c.h.b16 %v404
      %v435 = vunpack.c.l.b16 %v405
      %v436 = vunpack.c.h.b16 %v405
      %v437 = vunpack.c.l.b16 %v406
      %v438 = vunpack.c.h.b16 %v406
      %v439 = vunpack.c.l.b16 %v407
      %v440 = vunpack.c.h.b16 %v407
      %v441 = vunpack.c.l.b16 %v408
      %v442 = vunpack.c.h.b16 %v408
      %v443 = vunpack.c.l.b16 %v409
      %v444 = vunpack.c.h.b16 %v409
      %v445 = vunpack.c.l.b16 %v410
      %v446 = vunpack.c.h.b16 %v410
      %v447 = vunpack.c.l.b16 %v411
      %v448 = vunpack.c.h.b16 %v411
      %v449 = vpack.c.b16 %v429, %v427
      %v450 = vpack.c.b16 %v430, %v428
      %v451 = vpack.c.b16 %v433, %v431
      %v452 = vpack.c.b16 %v434, %v432
      %v453 = vpack.c.b16 %v437, %v435
      %v454 = vpack.c.b16 %v438, %v436
      %v455 = vpack.c.b16 %v441, %v439
      %v456 = vpack.c.b16 %v442, %v440
      %v457 = vpack.c.b16 %v445, %v443
      %v458 = vpack.c.b16 %v446, %v444
      %v459 = vpack.c.b16 %v447, %v447
      %v460 = vpack.c.b16 %v448, %v448
      %v472 = vsel %vm265, %v415, 0
      %v475 = vsel %vm269, %v459, 0
      %v478 = vsel %vm269, %v460, 0
      %480 = vmatpush.bf16.msra.mxu0 0
      %481 = vmatpush.bf16.msra.mxu0 0
      %482 = vmatpush.bf16.msra.mxu0 %v475
      %483 = vmatpush.bf16.msra.mxu0 %v457
      %484 = vmatpush.bf16.msra.mxu0 %v455
      %485 = vmatpush.bf16.msra.mxu0 %v453
      %486 = vmatpush.bf16.msra.mxu0 %v451
      %487 = vmatpush.bf16.msra.mxu0 %v449
      %488 = vmatmul.bf16.gmra.mxu0 %v472
      %v489 = vpop.f32.mrf.mxu0
      %v490 = vadd.f32 0.0, %v489
      %v491 = vpop.f32.mrf.mxu0
      %v492 = vadd.f32 0.0, %v491
      %493 = vdwg.mxu0
      %494 = vmatpush.bf16.msra.mxu0 0
      %495 = vmatpush.bf16.msra.mxu0 0
      %496 = vmatpush.bf16.msra.mxu0 %v478
      %497 = vmatpush.bf16.msra.mxu0 %v458
      %498 = vmatpush.bf16.msra.mxu0 %v456
      %499 = vmatpush.bf16.msra.mxu0 %v454
      %500 = vmatpush.bf16.msra.mxu0 %v452
      %501 = vmatpush.bf16.msra.mxu0 %v450
      %502 = vmatmul.bf16.gmra.mxu0 %v472
      %v503 = vpop.f32.mrf.mxu0
      %v504 = vadd.f32 0.0, %v503
      %v505 = vpop.f32.mrf.mxu0
      %v506 = vadd.f32 0.0, %v505
      %507 = vdwg.mxu0
      %v508 = vadd.f32 %v381, %v490
      %v509 = vadd.f32 %v395, %v504
      %v510 = vadd.f32 %v383, %v492
      %v511 = vadd.f32 %v397, %v506
      %v512 = vld [vmem:[%s165 + $0x4] sm:$0x7]
      %s513 = scalar_lea.vmem %s1, 264
      %v514 = vld [vmem:[%s513] sm:$0xff]
      %v515 = vld [vmem:[%s513 + $0x8] sm:$0xff]
      %v516 = vld [vmem:[%s513 + $0x10] sm:$0xff]
      %v517 = vld [vmem:[%s513 + $0x18] sm:$0xff]
      %v518 = vld [vmem:[%s513 + $0x20] sm:$0xff]
      %v519 = vld [vmem:[%s513 + $0x28] sm:$0xff]
      %v520 = vld [vmem:[%s513 + $0x30] sm:$0xff]
      %v521 = vld [vmem:[%s513 + $0x38] sm:$0xff]
      %v522 = vld [vmem:[%s513 + $0x40] sm:$0xff]
      %v523 = vld [vmem:[%s513 + $0x48] sm:$0xff]
      %v524 = vld [vmem:[%s513 + $0x50] sm:$0x33]
      %v526 = vunpack.c.l.b16 %v512
      %v527 = vpack.c.b16 %v526, %v413
      %v529 = vshrl.u32 %v527, 16
      %v531 = vrot.slane %v529, 1
      %v532 = vshll.u32 %v527, 16
      %v534 = vrot.slane %v532, 2
      %v535 = vor.u32 %v531, %v534
      %v547 = vunpack.c.l.b16 %v514
      %v548 = vunpack.c.h.b16 %v514
      %v549 = vunpack.c.l.b16 %v515
      %v550 = vunpack.c.h.b16 %v515
      %v551 = vunpack.c.l.b16 %v516
      %v552 = vunpack.c.h.b16 %v516
      %v553 = vunpack.c.l.b16 %v517
      %v554 = vunpack.c.h.b16 %v517
      %v555 = vunpack.c.l.b16 %v518
      %v556 = vunpack.c.h.b16 %v518
      %v557 = vunpack.c.l.b16 %v519
      %v558 = vunpack.c.h.b16 %v519
      %v559 = vunpack.c.l.b16 %v520
      %v560 = vunpack.c.h.b16 %v520
      %v561 = vunpack.c.l.b16 %v521
      %v562 = vunpack.c.h.b16 %v521
      %v563 = vunpack.c.l.b16 %v522
      %v564 = vunpack.c.h.b16 %v522
      %v565 = vunpack.c.l.b16 %v523
      %v566 = vunpack.c.h.b16 %v523
      %v567 = vunpack.c.l.b16 %v524
      %v568 = vunpack.c.h.b16 %v524
      %v569 = vpack.c.b16 %v549, %v547
      %v570 = vpack.c.b16 %v550, %v548
      %v571 = vpack.c.b16 %v553, %v551
      %v572 = vpack.c.b16 %v554, %v552
      %v573 = vpack.c.b16 %v557, %v555
      %v574 = vpack.c.b16 %v558, %v556
      %v575 = vpack.c.b16 %v561, %v559
      %v576 = vpack.c.b16 %v562, %v560
      %v577 = vpack.c.b16 %v565, %v563
      %v578 = vpack.c.b16 %v566, %v564
      %v579 = vpack.c.b16 %v567, %v567
      %v580 = vpack.c.b16 %v568, %v568
      %v592 = vsel %vm265, %v535, 0
      %v595 = vsel %vm269, %v579, 0
      %v598 = vsel %vm269, %v580, 0
      %600 = vmatpush.bf16.msra.mxu0 0
      %601 = vmatpush.bf16.msra.mxu0 0
      %602 = vmatpush.bf16.msra.mxu0 %v595
      %603 = vmatpush.bf16.msra.mxu0 %v577
      %604 = vmatpush.bf16.msra.mxu0 %v575
      %605 = vmatpush.bf16.msra.mxu0 %v573
      %606 = vmatpush.bf16.msra.mxu0 %v571
      %607 = vmatpush.bf16.msra.mxu0 %v569
      %608 = vmatmul.bf16.gmra.mxu0 %v592
      %v609 = vpop.f32.mrf.mxu0
      %v610 = vadd.f32 0.0, %v609
      %v611 = vpop.f32.mrf.mxu0
      %v612 = vadd.f32 0.0, %v611
      %613 = vdwg.mxu0
      %614 = vmatpush.bf16.msra.mxu0 0
      %615 = vmatpush.bf16.msra.mxu0 0
      %616 = vmatpush.bf16.msra.mxu0 %v598
      %617 = vmatpush.bf16.msra.mxu0 %v578
      %618 = vmatpush.bf16.msra.mxu0 %v576
      %619 = vmatpush.bf16.msra.mxu0 %v574
      %620 = vmatpush.bf16.msra.mxu0 %v572
      %621 = vmatpush.bf16.msra.mxu0 %v570
      %622 = vmatmul.bf16.gmra.mxu0 %v592
      %v623 = vpop.f32.mrf.mxu0
      %v624 = vadd.f32 0.0, %v623
      %v625 = vpop.f32.mrf.mxu0
      %v626 = vadd.f32 0.0, %v625
      %627 = vdwg.mxu0
      %v628 = vadd.f32 %v508, %v610
      %v629 = vadd.f32 %v509, %v624
      %v630 = vadd.f32 %v510, %v612
      %v631 = vadd.f32 %v511, %v626
      %v632 = vld [vmem:[%s165] sm:$0xc]
      %s633 = scalar_lea.vmem %s1, 352
      %v634 = vld [vmem:[%s633] sm:$0xff]
      %v635 = vld [vmem:[%s633 + $0x8] sm:$0xff]
      %v636 = vld [vmem:[%s633 + $0x10] sm:$0xff]
      %v637 = vld [vmem:[%s633 + $0x18] sm:$0xff]
      %v638 = vld [vmem:[%s633 + $0x20] sm:$0xff]
      %v639 = vld [vmem:[%s633 + $0x28] sm:$0xff]
      %v640 = vld [vmem:[%s633 + $0x30] sm:$0xff]
      %v641 = vld [vmem:[%s633 + $0x38] sm:$0xff]
      %v642 = vld [vmem:[%s633 + $0x40] sm:$0xff]
      %v643 = vld [vmem:[%s633 + $0x48] sm:$0xff]
      %v644 = vld [vmem:[%s633 + $0x50] sm:$0x33]
      %v646 = vunpack.c.l.b16 %v632
      %v647 = vpack.c.b16 %v526, %v646
      %v648 = vrot.slane %v647, 2
      %v660 = vunpack.c.l.b16 %v634
      %v661 = vunpack.c.h.b16 %v634
      %v662 = vunpack.c.l.b16 %v635
      %v663 = vunpack.c.h.b16 %v635
      %v664 = vunpack.c.l.b16 %v636
      %v665 = vunpack.c.h.b16 %v636
      %v666 = vunpack.c.l.b16 %v637
      %v667 = vunpack.c.h.b16 %v637
      %v668 = vunpack.c.l.b16 %v638
      %v669 = vunpack.c.h.b16 %v638
      %v670 = vunpack.c.l.b16 %v639
      %v671 = vunpack.c.h.b16 %v639
      %v672 = vunpack.c.l.b16 %v640
      %v673 = vunpack.c.h.b16 %v640
      %v674 = vunpack.c.l.b16 %v641
      %v675 = vunpack.c.h.b16 %v641
      %v676 = vunpack.c.l.b16 %v642
      %v677 = vunpack.c.h.b16 %v642
      %v678 = vunpack.c.l.b16 %v643
      %v679 = vunpack.c.h.b16 %v643
      %v680 = vunpack.c.l.b16 %v644
      %v681 = vunpack.c.h.b16 %v644
      %v682 = vpack.c.b16 %v662, %v660
      %v683 = vpack.c.b16 %v663, %v661
      %v684 = vpack.c.b16 %v666, %v664
      %v685 = vpack.c.b16 %v667, %v665
      %v686 = vpack.c.b16 %v670, %v668
      %v687 = vpack.c.b16 %v671, %v669
      %v688 = vpack.c.b16 %v674, %v672
      %v689 = vpack.c.b16 %v675, %v673
      %v690 = vpack.c.b16 %v678, %v676
      %v691 = vpack.c.b16 %v679, %v677
      %v692 = vpack.c.b16 %v680, %v680
      %v693 = vpack.c.b16 %v681, %v681
      %v705 = vsel %vm265, %v648, 0
      %v708 = vsel %vm269, %v692, 0
      %v711 = vsel %vm269, %v693, 0
      %713 = vmatpush.bf16.msra.mxu0 0
      %714 = vmatpush.bf16.msra.mxu0 0
      %715 = vmatpush.bf16.msra.mxu0 %v708
      %716 = vmatpush.bf16.msra.mxu0 %v690
      %717 = vmatpush.bf16.msra.mxu0 %v688
      %718 = vmatpush.bf16.msra.mxu0 %v686
      %719 = vmatpush.bf16.msra.mxu0 %v684
      %720 = vmatpush.bf16.msra.mxu0 %v682
      %721 = vmatmul.bf16.gmra.mxu0 %v705
      %v722 = vpop.f32.mrf.mxu0
      %v723 = vadd.f32 0.0, %v722
      %v724 = vpop.f32.mrf.mxu0
      %v725 = vadd.f32 0.0, %v724
      %726 = vdwg.mxu0
      %727 = vmatpush.bf16.msra.mxu0 0
      %728 = vmatpush.bf16.msra.mxu0 0
      %729 = vmatpush.bf16.msra.mxu0 %v711
      %730 = vmatpush.bf16.msra.mxu0 %v691
      %731 = vmatpush.bf16.msra.mxu0 %v689
      %732 = vmatpush.bf16.msra.mxu0 %v687
      %733 = vmatpush.bf16.msra.mxu0 %v685
      %734 = vmatpush.bf16.msra.mxu0 %v683
      %735 = vmatmul.bf16.gmra.mxu0 %v705
      %v736 = vpop.f32.mrf.mxu0
      %v737 = vadd.f32 0.0, %v736
      %v738 = vpop.f32.mrf.mxu0
      %v739 = vadd.f32 0.0, %v738
      %740 = vdwg.mxu0
      %v741 = vadd.f32 %v628, %v723
      %v742 = vadd.f32 %v629, %v737
      %v743 = vadd.f32 %v630, %v725
      %v744 = vadd.f32 %v631, %v739
      %v745 = vld [vmem:[%s2] sm:$0x3]
      %v747 = vperm.slane %v745, 0
      %v748 = vperm.slane %v745, 1
      %v751 = vadd.f32 %v741, %v747
      %v752 = vadd.f32 %v742, %v748
      %v753 = vadd.f32 %v743, %v747
      %v754 = vadd.f32 %v744, %v748
      %v755 = vmax.f32 %v751, 0.0
      %v756 = vmax.f32 %v752, 0.0
      %v757 = vmax.f32 %v753, 0.0
      %v758 = vmax.f32 %v754, 0.0
      %v759 = vpack.c.bf16 %v756, %v755
      %v760 = vpack.c.bf16 %v758, %v757
      %vm761 = vcmask 1043456
      %vm762 = vcmask 261124
      %vm763 = vmor %vm762, %vm761
      %764 = vst.msk [vmem:[%s170] sm:$0xff] %vm763, %v759
      %vm765 = vcmask 1040384
      %vm766 = vcmask 258052
      %vm767 = vmor %vm766, %vm765
      %768 = vst.msk [vmem:[%s170 + $0x8] sm:$0x11] %vm767, %v760
      %p769 = scmp.lt.s32.totalorder %s14, 1
      %s770 = scalar_select %p769, %s14, 1
      %s771 = smul.addr %s770, 4
      %s772 = smul.addr %s771, 4
      %s773 = scalar_lea.vmem %s3, %s772
      // Predicated region
      $region33: #{net_forward.4} parent=31 // pred_check
        %p774 = pneg %p100
      $region34: #{net_forward.4} parent=31 // pred_check_branch
        %776 = sbr.rel (%p774) target = $region36
      $region35: #{net_forward.4} parent=31 // pred_region
        _
      $region36: #{net_forward.4} parent=31 // pred_fallthru
        _
    $region32: #{net_forward.4} parent=5 // pred_fallthru
      _
    %p777 = scmp.le.s32.totalorder 2, %s9
    // Predicated region
    $region37: #{net_forward.4} parent=5 // pred_check
      %p778 = pneg %p777
    $region38: #{net_forward.4} parent=5 // pred_check_branch
      %780 = sbr.rel (%p778) target = $region40
    $region39: #{net_forward.4} parent=5 // pred_region
      %s781 = ssub.s32 %s9, 2
      // Predicated region
      $region41: #{net_forward.4} parent=39 // pred_check
        %p782 = pneg %p106
      $region42: #{net_forward.4} parent=39 // pred_check_branch
        %784 = sbr.rel (%p782) target = $region44
      $region43: #{net_forward.4} parent=39 // pred_region
        %p785 = scmp.lt.s32.totalorder %s15, 1
        %s786 = scalar_select %p785, %s15, 1
        %s787 = smul.addr %s786, 4
        %s788 = smul.addr %s787, 4
        %s789 = scalar_lea.vmem %s3, %s788
      $region44: #{net_forward.4} parent=39 // pred_fallthru
        _
    $region40: #{net_forward.4} parent=5 // pred_fallthru
      _
  $region6: #{net_forward.4} parent=0 // loop_footer
    %s13 = sadd.s32 1, %s9
  $region7: #{net_forward.4} parent=0 // loop_footer_branch
    %8 = sbr.rel target = $region3
  $region8: #{net_forward.4} parent=0 // loop_exit
    _

// kernel: net_forward.5
$region0: #{net_forward.5}
  #allocation0 [shape = 'u32[]', space=smem, size = 0x4, offset = 0x4, fixed_abs, tag = 'smem constant byte address 0x4 - core index']
  #allocation1 [shape = 'u32[72,128]{1,0:T(1,128)}', space=vmem, size = 0x9000, scoped, tag = 'internal scratch']
  %s0 = inlined_call_operand.vmem [shape: bf16[16,400], index: 0, kind: input, shape index: {}]
  %s1 = inlined_call_operand.vmem [shape: bf16[400,128], index: 1, kind: input, shape index: {}]
  %s2 = inlined_call_operand.vmem [shape: f32[1,128], index: 2, kind: input, shape index: {}]
  %s3 = inlined_call_operand.vmem [shape: bf16[128,128], index: 3, kind: input, shape index: {}]
  %s4 = inlined_call_operand.vmem [shape: f32[1,128], index: 4, kind: input, shape index: {}]
  %s5 = inlined_call_operand.vmem [shape: bf16[128,128], index: 5, kind: input, shape index: {}]
  %s6 = inlined_call_operand.vmem [shape: f32[1,128], index: 6, kind: input, shape index: {}]
  %s7 = inlined_call_operand.vmem [shape: f32[16,128], index: 7, kind: output, shape index: {}]
  %s8 = sld [smem:[#allocation0]]
  $region38: #{net_forward.5} parent=0
    _
  %s10 = ssub.s32 1, %s8
  %s11 = scalar_select 0, %s10, %s8
  // Predicated region
  $region2: #{net_forward.5} parent=0 // pred_check
    _
  $region3: #{net_forward.5} parent=0 // pred_check_branch
    %13 = sbr.rel (0) target = $region5
  $region4: #{net_forward.5} parent=0 // pred_region
    _
  $region5: #{net_forward.5} parent=0 // pred_fallthru
    _
  // Predicated region
  $region6: #{net_forward.5} parent=0 // pred_check
    _
  $region7: #{net_forward.5} parent=0 // pred_check_branch
    %15 = sbr.rel (0) target = $region9
  $region8: #{net_forward.5} parent=0 // pred_region
    _
  $region9: #{net_forward.5} parent=0 // pred_fallthru
    _
  // Predicated region
  $region10: #{net_forward.5} parent=0 // pred_check
    _
  $region11: #{net_forward.5} parent=0 // pred_check_branch
    %17 = sbr.rel (0) target = $region13
  $region12: #{net_forward.5} parent=0 // pred_region
    _
  $region13: #{net_forward.5} parent=0 // pred_fallthru
    _
  // Predicated region
  $region14: #{net_forward.5} parent=0 // pred_check
    _
  $region15: #{net_forward.5} parent=0 // pred_check_branch
    %19 = sbr.rel (0) target = $region17
  $region16: #{net_forward.5} parent=0 // pred_region
    _
  $region17: #{net_forward.5} parent=0 // pred_fallthru
    _
  // Predicated region
  $region18: #{net_forward.5} parent=0 // pred_check
    _
  $region19: #{net_forward.5} parent=0 // pred_check_branch
    %21 = sbr.rel (0) target = $region21
  $region20: #{net_forward.5} parent=0 // pred_region
    _
  $region21: #{net_forward.5} parent=0 // pred_fallthru
    _
  // Predicated region
  $region22: #{net_forward.5} parent=0 // pred_check
    _
  $region23: #{net_forward.5} parent=0 // pred_check_branch
    %23 = sbr.rel (0) target = $region25
  $region24: #{net_forward.5} parent=0 // pred_region
    _
  $region25: #{net_forward.5} parent=0 // pred_fallthru
    _
  // Predicated region
  $region26: #{net_forward.5} parent=0 // pred_check
    _
  $region27: #{net_forward.5} parent=0 // pred_check_branch
    %25 = sbr.rel (0) target = $region29
  $region28: #{net_forward.5} parent=0 // pred_region
    _
  $region29: #{net_forward.5} parent=0 // pred_fallthru
    _
  %v27 = vld [vmem:[%s0] sm:$0xff]
  %v28 = vld [vmem:[%s0 + $0x8] sm:$0xff]
  %v29 = vld [vmem:[%s0 + $0x10] sm:$0xff]
  %v30 = vld [vmem:[%s0 + $0x18] sm:$0xff]
  %v31 = vld [vmem:[%s1] sm:$0xf]
  %v32 = vld [vmem:[%s1 + $0x4] sm:$0xf]
  %v33 = vld [vmem:[%s1 + $0x8] sm:$0xf]
  %v34 = vld [vmem:[%s1 + $0xc] sm:$0xf]
  %v35 = vld [vmem:[%s1 + $0x10] sm:$0xf]
  %v36 = vld [vmem:[%s1 + $0x14] sm:$0xf]
  %v37 = vld [vmem:[%s1 + $0x18] sm:$0xf]
  %v38 = vld [vmem:[%s1 + $0x1c] sm:$0xf]
  %v39 = vld [vmem:[%s1 + $0x20] sm:$0xf]
  %v40 = vld [vmem:[%s1 + $0x24] sm:$0xf]
  %v41 = vld [vmem:[%s1 + $0x28] sm:$0xf]
  %v42 = vld [vmem:[%s1 + $0x2c] sm:$0xf]
  %v43 = vld [vmem:[%s1 + $0x30] sm:$0xf]
  %v44 = vld [vmem:[%s1 + $0x34] sm:$0xf]
  %v45 = vld [vmem:[%s1 + $0x38] sm:$0xf]
  %v46 = vld [vmem:[%s1 + $0x3c] sm:$0xf]
  %v47 = vld [vmem:[%s1 + $0x40] sm:$0xf]
  %v48 = vld [vmem:[%s1 + $0x44] sm:$0xf]
  %v49 = vld [vmem:[%s1 + $0x48] sm:$0xf]
  %v50 = vld [vmem:[%s1 + $0x4c] sm:$0xf]
  %v51 = vld [vmem:[%s1 + $0x50] sm:$0xf]
  %v52 = vld [vmem:[%s1 + $0x54] sm:$0xf]
  %v53 = vld [vmem:[%s1 + $0x58] sm:$0xf]
  %v54 = vld [vmem:[%s1 + $0x5c] sm:$0xf]
  %v55 = vld [vmem:[%s1 + $0x60] sm:$0xf]
  %v56 = vld [vmem:[%s1 + $0x64] sm:$0xf]
  %v57 = vld [vmem:[%s1 + $0x68] sm:$0xf]
  %v58 = vld [vmem:[%s1 + $0x6c] sm:$0xf]
  %v59 = vld [vmem:[%s1 + $0x70] sm:$0xf]
  %v60 = vld [vmem:[%s1 + $0x74] sm:$0xf]
  %v61 = vld [vmem:[%s1 + $0x78] sm:$0xf]
  %v62 = vld [vmem:[%s1 + $0x7c] sm:$0xf]
  %v63 = vld [vmem:[%s1 + $0x80] sm:$0xf]
  %v64 = vld [vmem:[%s1 + $0x84] sm:$0xf]
  %v65 = vld [vmem:[%s1 + $0x88] sm:$0xf]
  %v66 = vld [vmem:[%s1 + $0x8c] sm:$0xf]
  %v67 = vld [vmem:[%s1 + $0x90] sm:$0xf]
  %v68 = vld [vmem:[%s1 + $0x94] sm:$0xf]
  %v69 = vld [vmem:[%s1 + $0x98] sm:$0xf]
  %v70 = vld [vmem:[%s1 + $0x9c] sm:$0xf]
  %v71 = vld [vmem:[%s1 + $0xa0] sm:$0xf]
  %v72 = vld [vmem:[%s1 + $0xa4] sm:$0xf]
  %v73 = vld [vmem:[%s1 + $0xa8] sm:$0xf]
  %v74 = vld [vmem:[%s1 + $0xac] sm:$0xf]
  %v75 = vld [vmem:[%s1 + $0xb0] sm:$0xf]
  %v76 = vld [vmem:[%s1 + $0xb4] sm:$0xf]
  %v77 = vld [vmem:[%s1 + $0xb8] sm:$0xf]
  %v78 = vld [vmem:[%s1 + $0xbc] sm:$0xf]
  %v79 = vld [vmem:[%s1 + $0xc0] sm:$0xf]
  %v80 = vld [vmem:[%s1 + $0xc4] sm:$0xf]
  %v81 = vld [vmem:[%s2] sm:$0x1]
  %v83 = vperm.slane %v81, 0
  %v89 = vunpack.c.l.b16 %v27
  %v90 = vunpack.c.h.b16 %v27
  %v91 = vunpack.c.l.b16 %v28
  %v92 = vunpack.c.h.b16 %v28
  %v93 = vunpack.c.l.b16 %v29
  %v94 = vunpack.c.h.b16 %v29
  %v95 = vunpack.c.l.b16 %v30
  %v96 = vunpack.c.h.b16 %v30
  %v97 = vpack.c.b16 %v93, %v89
  %v98 = vpack.c.b16 %v94, %v90
  %v99 = vpack.c.b16 %v95, %v91
  %v100 = vpack.c.b16 %v96, %v92
  %v154 = vunpack.c.l.b16 %v31
  %v155 = vunpack.c.l.b16 %v32
  %v156 = vunpack.c.l.b16 %v33
  %v157 = vunpack.c.l.b16 %v34
  %v158 = vunpack.c.l.b16 %v35
  %v159 = vunpack.c.l.b16 %v36
  %v160 = vunpack.c.l.b16 %v37
  %v161 = vunpack.c.l.b16 %v38
  %v162 = vunpack.c.l.b16 %v39
  %v163 = vunpack.c.l.b16 %v40
  %v164 = vunpack.c.l.b16 %v41
  %v165 = vunpack.c.l.b16 %v42
  %v166 = vunpack.c.l.b16 %v43
  %v167 = vunpack.c.l.b16 %v44
  %v168 = vunpack.c.l.b16 %v45
  %v169 = vunpack.c.l.b16 %v46
  %v170 = vunpack.c.l.b16 %v47
  %v171 = vunpack.c.l.b16 %v48
  %v172 = vunpack.c.l.b16 %v49
  %v173 = vunpack.c.l.b16 %v50
  %v174 = vunpack.c.l.b16 %v51
  %v175 = vunpack.c.l.b16 %v52
  %v176 = vunpack.c.l.b16 %v53
  %v177 = vunpack.c.l.b16 %v54
  %v178 = vunpack.c.l.b16 %v55
  %v179 = vunpack.c.l.b16 %v56
  %v180 = vunpack.c.l.b16 %v57
  %v181 = vunpack.c.l.b16 %v58
  %v182 = vunpack.c.l.b16 %v59
  %v183 = vunpack.c.l.b16 %v60
  %v184 = vunpack.c.l.b16 %v61
  %v185 = vunpack.c.l.b16 %v62
  %v186 = vunpack.c.l.b16 %v63
  %v187 = vunpack.c.l.b16 %v64
  %v188 = vunpack.c.l.b16 %v65
  %v189 = vunpack.c.l.b16 %v66
  %v190 = vunpack.c.l.b16 %v67
  %v191 = vunpack.c.l.b16 %v68
  %v192 = vunpack.c.l.b16 %v69
  %v193 = vunpack.c.l.b16 %v70
  %v194 = vunpack.c.l.b16 %v71
  %v195 = vunpack.c.l.b16 %v72
  %v196 = vunpack.c.l.b16 %v73
  %v197 = vunpack.c.l.b16 %v74
  %v198 = vunpack.c.l.b16 %v75
  %v199 = vunpack.c.l.b16 %v76
  %v200 = vunpack.c.l.b16 %v77
  %v201 = vunpack.c.l.b16 %v78
  %v202 = vunpack.c.l.b16 %v79
  %v203 = vunpack.c.l.b16 %v80
  %v204 = vpack.c.b16 %v155, %v154
  %v205 = vpack.c.b16 %v157, %v156
  %v206 = vpack.c.b16 %v159, %v158
  %v207 = vpack.c.b16 %v161, %v160
  %v208 = vpack.c.b16 %v163, %v162
  %v209 = vpack.c.b16 %v165, %v164
  %v210 = vpack.c.b16 %v167, %v166
  %v211 = vpack.c.b16 %v169, %v168
  %v212 = vpack.c.b16 %v171, %v170
  %v213 = vpack.c.b16 %v173, %v172
  %v214 = vpack.c.b16 %v175, %v174
  %v215 = vpack.c.b16 %v177, %v176
  %v216 = vpack.c.b16 %v179, %v178
  %v217 = vpack.c.b16 %v181, %v180
  %v218 = vpack.c.b16 %v183, %v182
  %v219 = vpack.c.b16 %v185, %v184
  %v220 = vpack.c.b16 %v187, %v186
  %v221 = vpack.c.b16 %v189, %v188
  %v222 = vpack.c.b16 %v191, %v190
  %v223 = vpack.c.b16 %v193, %v192
  %v224 = vpack.c.b16 %v195, %v194
  %v225 = vpack.c.b16 %v197, %v196
  %v226 = vpack.c.b16 %v199, %v198
  %v227 = vpack.c.b16 %v201, %v200
  %v228 = vpack.c.b16 %v203, %v202
  %vm254 = vcmask 130048
  %v256 = vsel %vm254, %v100, 0
  %258 = vmatpush.bf16.msra.mxu0 %v211
  %259 = vmatpush.bf16.msra.mxu0 %v210
  %260 = vmatpush.bf16.msra.mxu0 %v209
  %261 = vmatpush.bf16.msra.mxu0 %v208
  %262 = vmatpush.bf16.msra.mxu0 %v207
  %263 = vmatpush.bf16.msra.mxu0 %v206
  %264 = vmatpush.bf16.msra.mxu0 %v205
  %265 = vmatpush.bf16.msra.mxu0 %v204
  %266 = vmatmul.bf16.gmra.mxu0 %v97
  %v267 = vpop.f32.mrf.mxu0
  %v268 = vadd.f32 %v83, %v267
  %v269 = vpop.f32.mrf.mxu0
  %v270 = vadd.f32 %v83, %v269
  %271 = vdwg.mxu0
  %272 = vmatpush.bf16.msra.mxu0 %v219
  %273 = vmatpush.bf16.msra.mxu0 %v218
  %274 = vmatpush.bf16.msra.mxu0 %v217
  %275 = vmatpush.bf16.msra.mxu0 %v216
  %276 = vmatpush.bf16.msra.mxu0 %v215
  %277 = vmatpush.bf16.msra.mxu0 %v214
  %278 = vmatpush.bf16.msra.mxu0 %v213
  %279 = vmatpush.bf16.msra.mxu0 %v212
  %280 = vmatmul.bf16.gmra.mxu0 %v98
  %v281 = vpop.f32.mrf.mxu0
  %v282 = vadd.f32 %v268, %v281
  %v283 = vpop.f32.mrf.mxu0
  %v284 = vadd.f32 %v270, %v283
  %285 = vdwg.mxu0
  %286 = vmatpush.bf16.msra.mxu0 %v227
  %287 = vmatpush.bf16.msra.mxu0 %v226
  %288 = vmatpush.bf16.msra.mxu0 %v225
  %289 = vmatpush.bf16.msra.mxu0 %v224
  %290 = vmatpush.bf16.msra.mxu0 %v223
  %291 = vmatpush.bf16.msra.mxu0 %v222
  %292 = vmatpush.bf16.msra.mxu0 %v221
  %293 = vmatpush.bf16.msra.mxu0 %v220
  %294 = vmatmul.bf16.gmra.mxu0 %v99
  %v295 = vpop.f32.mrf.mxu0
  %v296 = vadd.f32 %v282, %v295
  %v297 = vpop.f32.mrf.mxu0
  %v298 = vadd.f32 %v284, %v297
  %299 = vdwg.mxu0
  %300 = vmatpush.bf16.msra.mxu0 0
  %301 = vmatpush.bf16.msra.mxu0 0
  %302 = vmatpush.bf16.msra.mxu0 0
  %303 = vmatpush.bf16.msra.mxu0 0
  %304 = vmatpush.bf16.msra.mxu0 0
  %305 = vmatpush.bf16.msra.mxu0 0
  %306 = vmatpush.bf16.msra.mxu0 0
  %307 = vmatpush.bf16.msra.mxu0 %v228
  %308 = vmatmul.bf16.gmra.mxu0 %v256
  %v309 = vpop.f32.mrf.mxu0
  %v310 = vadd.f32 %v296, %v309
  %v311 = vpop.f32.mrf.mxu0
  %v312 = vadd.f32 %v298, %v311
  %313 = vdwg.mxu0
  %v314 = vmax.f32 %v310, 0.0
  %v315 = vmax.f32 %v312, 0.0
  %v316 = vpack.c.bf16 %v315, %v314
  %v317 = vld [vmem:[%s3] sm:$0xf]
  %v318 = vld [vmem:[%s3 + $0x4] sm:$0xf]
  %v319 = vld [vmem:[%s3 + $0x8] sm:$0xf]
  %v320 = vld [vmem:[%s3 + $0xc] sm:$0xf]
  %v321 = vld [vmem:[%s3 + $0x10] sm:$0xf]
  %v322 = vld [vmem:[%s3 + $0x14] sm:$0xf]
  %v323 = vld [vmem:[%s3 + $0x18] sm:$0xf]
  %v324 = vld [vmem:[%s3 + $0x1c] sm:$0xf]
  %v325 = vld [vmem:[%s3 + $0x20] sm:$0xf]
  %v326 = vld [vmem:[%s3 + $0x24] sm:$0xf]
  %v327 = vld [vmem:[%s3 + $0x28] sm:$0xf]
  %v328 = vld [vmem:[%s3 + $0x2c] sm:$0xf]
  %v329 = vld [vmem:[%s3 + $0x30] sm:$0xf]
  %v330 = vld [vmem:[%s3 + $0x34] sm:$0xf]
  %v331 = vld [vmem:[%s3 + $0x38] sm:$0xf]
  %v332 = vld [vmem:[%s3 + $0x3c] sm:$0xf]
  %v333 = vld [vmem:[%s4] sm:$0x1]
  %v335 = vperm.slane %v333, 0
  %v353 = vunpack.c.l.b16 %v317
  %v354 = vunpack.c.l.b16 %v318
  %v355 = vunpack.c.l.b16 %v319
  %v356 = vunpack.c.l.b16 %v320
  %v357 = vunpack.c.l.b16 %v321
  %v358 = vunpack.c.l.b16 %v322
  %v359 = vunpack.c.l.b16 %v323
  %v360 = vunpack.c.l.b16 %v324
  %v361 = vunpack.c.l.b16 %v325
  %v362 = vunpack.c.l.b16 %v326
  %v363 = vunpack.c.l.b16 %v327
  %v364 = vunpack.c.l.b16 %v328
  %v365 = vunpack.c.l.b16 %v329
  %v366 = vunpack.c.l.b16 %v330
  %v367 = vunpack.c.l.b16 %v331
  %v368 = vunpack.c.l.b16 %v332
  %v369 = vpack.c.b16 %v354, %v353
  %v370 = vpack.c.b16 %v356, %v355
  %v371 = vpack.c.b16 %v358, %v357
  %v372 = vpack.c.b16 %v360, %v359
  %v373 = vpack.c.b16 %v362, %v361
  %v374 = vpack.c.b16 %v364, %v363
  %v375 = vpack.c.b16 %v366, %v365
  %v376 = vpack.c.b16 %v368, %v367
  %385 = vmatpush.bf16.msra.mxu0 %v376
  %386 = vmatpush.bf16.msra.mxu0 %v375
  %387 = vmatpush.bf16.msra.mxu0 %v374
  %388 = vmatpush.bf16.msra.mxu0 %v373
  %389 = vmatpush.bf16.msra.mxu0 %v372
  %390 = vmatpush.bf16.msra.mxu0 %v371
  %391 = vmatpush.bf16.msra.mxu0 %v370
  %392 = vmatpush.bf16.msra.mxu0 %v369
  %393 = vmatmul.bf16.gmra.mxu0 %v316
  %v394 = vpop.f32.mrf.mxu0
  %v395 = vadd.f32 %v335, %v394
  %v396 = vpop.f32.mrf.mxu0
  %v397 = vadd.f32 %v335, %v396
  %398 = vdwg.mxu0
  %v399 = vmax.f32 %v395, 0.0
  %v400 = vmax.f32 %v397, 0.0
  %v401 = vpack.c.bf16 %v400, %v399
  %v402 = vld [vmem:[%s5] sm:$0xf]
  %v403 = vld [vmem:[%s5 + $0x4] sm:$0xf]
  %v404 = vld [vmem:[%s5 + $0x8] sm:$0xf]
  %v405 = vld [vmem:[%s5 + $0xc] sm:$0xf]
  %v406 = vld [vmem:[%s5 + $0x10] sm:$0xf]
  %v407 = vld [vmem:[%s5 + $0x14] sm:$0xf]
  %v408 = vld [vmem:[%s5 + $0x18] sm:$0xf]
  %v409 = vld [vmem:[%s5 + $0x1c] sm:$0xf]
  %v410 = vld [vmem:[%s5 + $0x20] sm:$0xf]
  %v411 = vld [vmem:[%s5 + $0x24] sm:$0xf]
  %v412 = vld [vmem:[%s5 + $0x28] sm:$0xf]
  %v413 = vld [vmem:[%s5 + $0x2c] sm:$0xf]
  %v414 = vld [vmem:[%s5 + $0x30] sm:$0xf]
  %v415 = vld [vmem:[%s5 + $0x34] sm:$0xf]
  %v416 = vld [vmem:[%s5 + $0x38] sm:$0xf]
  %v417 = vld [vmem:[%s5 + $0x3c] sm:$0xf]
  %v418 = vld [vmem:[%s6] sm:$0x1]
  %v420 = vperm.slane %v418, 0
  %v438 = vunpack.c.l.b16 %v402
  %v439 = vunpack.c.l.b16 %v403
  %v440 = vunpack.c.l.b16 %v404
  %v441 = vunpack.c.l.b16 %v405
  %v442 = vunpack.c.l.b16 %v406
  %v443 = vunpack.c.l.b16 %v407
  %v444 = vunpack.c.l.b16 %v408
  %v445 = vunpack.c.l.b16 %v409
  %v446 = vunpack.c.l.b16 %v410
  %v447 = vunpack.c.l.b16 %v411
  %v448 = vunpack.c.l.b16 %v412
  %v449 = vunpack.c.l.b16 %v413
  %v450 = vunpack.c.l.b16 %v414
  %v451 = vunpack.c.l.b16 %v415
  %v452 = vunpack.c.l.b16 %v416
  %v453 = vunpack.c.l.b16 %v417
  %v454 = vpack.c.b16 %v439, %v438
  %v455 = vpack.c.b16 %v441, %v440
  %v456 = vpack.c.b16 %v443, %v442
  %v457 = vpack.c.b16 %v445, %v444
  %v458 = vpack.c.b16 %v447, %v446
  %v459 = vpack.c.b16 %v449, %v448
  %v460 = vpack.c.b16 %v451, %v450
  %v461 = vpack.c.b16 %v453, %v452
  %470 = vmatpush.bf16.msra.mxu0 %v461
  %471 = vmatpush.bf16.msra.mxu0 %v460
  %472 = vmatpush.bf16.msra.mxu0 %v459
  %473 = vmatpush.bf16.msra.mxu0 %v458
  %474 = vmatpush.bf16.msra.mxu0 %v457
  %475 = vmatpush.bf16.msra.mxu0 %v456
  %476 = vmatpush.bf16.msra.mxu0 %v455
  %477 = vmatpush.bf16.msra.mxu0 %v454
  %478 = vmatmul.bf16.gmra.mxu0 %v401
  %v479 = vpop.f32.mrf.mxu0
  %v480 = vadd.f32 %v420, %v479
  %v481 = vpop.f32.mrf.mxu0
  %v482 = vadd.f32 %v420, %v481
  %483 = vdwg.mxu0
  %484 = vst [vmem:[%s7] sm:$0xff] %v480
  %485 = vst [vmem:[%s7 + $0x8] sm:$0xff] %v482
  // Predicated region
  $region30: #{net_forward.5} parent=0 // pred_check
    _
  $region31: #{net_forward.5} parent=0 // pred_check_branch
    %487 = sbr.rel (0) target = $region33
  $region32: #{net_forward.5} parent=0 // pred_region
    _
  $region33: #{net_forward.5} parent=0 // pred_fallthru
    _
  // Predicated region
  $region34: #{net_forward.5} parent=0 // pred_check
    _
  $region35: #{net_forward.5} parent=0 // pred_check_branch
    %489 = sbr.rel (0) target = $region37
  $region36: #{net_forward.5} parent=0 // pred_region
    _
  $region37: #{net_forward.5} parent=0 // pred_fallthru
    _

</llo_original>
